<compile_context>
chip_gen: v5e
topology: v5e:2x2
jax: 0.10.0
libtpu: 0.0.40
codegen_flags: <defaults>
</compile_context>

<pallas_src>
import functools

import numpy as np
import jax
import jax.numpy as jnp
from jax import lax
from jax.experimental import pallas as pl
from jax.experimental.pallas import tpu as pltpu


# ---------------------------------------------------------------------------
# Per-generation hardware configuration
# ---------------------------------------------------------------------------

def _hw_config():
    """Returns (vmem_limit_bytes, tm_target, tk_target, tq_target).

    v7x has 64 MiB physical VMEM per TensorCore (half of v5e/v6e) and 2 TCs per
    chip, so keep the scoped limit at 32 MiB and use smaller matmul tiles there;
    on v5e/v6e allow 64 MiB and bigger tiles (fewer grid steps, higher AI).
    """
    cap = None
    try:
        cap = int(pltpu.get_tpu_info().vmem_capacity_bytes)
    except Exception:
        cap = None
    if cap is not None and cap <= 64 * 1024 * 1024:
        return 32 * 1024 * 1024, 256, 512, 256      # v7x-class
    return 64 * 1024 * 1024, 512, 1024, 256          # v5e / v6e


def _pick_tile(dim, target, align):
    """Largest multiple of `align` that divides `dim`, capped at `target`.

    Falls back to the full dimension only when no aligned divisor <= target
    exists (awkward sizes); demo and typical model dims never hit that path.
    """
    if dim <= target:
        return dim
    t = (target // align) * align
    while t >= align:
        if dim % t == 0:
            return t
        t -= align
    return dim


# ---------------------------------------------------------------------------
# Kernel 1: fused head-major QKV projection  (x @ [Wq_h|Wk_h|Wv_h] + bias)
# ---------------------------------------------------------------------------

def _qkv_proj_kernel(x_ref, w_ref, b_ref, q_ref, k_ref, v_ref, acc_ref, *, d_k):
    @pl.when(pl.program_id(2) == 0)
    def _():
        acc_ref[...] = jnp.zeros_like(acc_ref)

    acc_ref[...] += jnp.dot(x_ref[...], w_ref[0],
                            preferred_element_type=jnp.float32)

    @pl.when(pl.program_id(2) == pl.num_programs(2) - 1)
    def _():
        y = acc_ref[...] + b_ref[0]                 # (tm, 2*d_k + d_v), f32
        # Single lane-dense MXU job; split into q/k/v only once per output tile.
        q_ref[0] = y[:, :d_k].astype(q_ref.dtype)
        k_ref[0] = y[:, d_k:2 * d_k].astype(k_ref.dtype)
        v_ref[0] = y[:, 2 * d_k:].astype(v_ref.dtype)


def qkv_projection(x2, w_qkv_h, b_qkv_h, d_k, d_v, out_dtype, *, tm, tk, vmem_limit):
    """x2: (M, d_x); w_qkv_h: (H, d_x, 2*d_k+d_v) per-head [Wq|Wk|Wv] effective
    weights; b_qkv_h: (H, 1, 2*d_k+d_v).

    Returns head-major qp (H, M, d_k), kp (H, M, d_k), vp (H, M, d_v)."""
    M, d_x = x2.shape
    H, _, D_h = w_qkv_h.shape
    assert D_h == 2 * d_k + d_v
    tm = _pick_tile(M, tm, 8)
    tk = _pick_tile(d_x, tk, 128)
    grid = (M // tm, H, d_x // tk)
    kernel = functools.partial(_qkv_proj_kernel, d_k=d_k)
    return pl.pallas_call(
        kernel,
        out_shape=(
            jax.ShapeDtypeStruct((H, M, d_k), out_dtype),
            jax.ShapeDtypeStruct((H, M, d_k), out_dtype),
            jax.ShapeDtypeStruct((H, M, d_v), out_dtype),
        ),
        grid_spec=pltpu.PrefetchScalarGridSpec(
            num_scalar_prefetch=0,
            grid=grid,
            in_specs=[
                pl.BlockSpec((tm, tk), lambda i, h, k: (i, k)),
                pl.BlockSpec((1, tk, D_h), lambda i, h, k: (h, k, 0)),
                pl.BlockSpec((1, 1, D_h), lambda i, h, k: (h, 0, 0)),
            ],
            out_specs=(
                pl.BlockSpec((1, tm, d_k), lambda i, h, k: (h, i, 0)),
                pl.BlockSpec((1, tm, d_k), lambda i, h, k: (h, i, 0)),
                pl.BlockSpec((1, tm, d_v), lambda i, h, k: (h, i, 0)),
            ),
            scratch_shapes=[pltpu.VMEM((tm, D_h), jnp.float32)],
        ),
        compiler_params=pltpu.CompilerParams(
            dimension_semantics=("parallel", "parallel", "arbitrary"),
            vmem_limit_bytes=vmem_limit,
        ),
    )(x2, w_qkv_h, b_qkv_h)


# ---------------------------------------------------------------------------
# Kernel 2: tiled multi-head attention with fc_o fused into the epilogue
# ---------------------------------------------------------------------------

def _mha_fco_kernel(q_ref, k_ref, v_ref, wo_ref, bo_ref,
                    attn_ref, out_ref, acc_ref, *, inv_scale):
    # TODO(synk): optional attention mask (masked_fill with -inf) not implemented;
    # the module's forward default is mask=None.
    h = pl.program_id(2)

    @pl.when(h == 0)
    def _():
        acc_ref[...] = jnp.zeros_like(acc_ref)

    q = q_ref[0, 0]                                   # (tq, d_k)
    k = k_ref[0, 0]                                   # (N , d_k)
    v = v_ref[0, 0]                                   # (N , d_v)

    # scores: contract the last dims directly (no k.T -> no XLU transpose)
    s = lax.dot_general(q, k, (((1,), (1,)), ((), ())),
                        preferred_element_type=jnp.float32) * inv_scale
    s = s - jnp.max(s, axis=-1, keepdims=True)        # stable softmax, f32
    e = jnp.exp(s)
    l = jnp.sum(e, axis=-1, keepdims=True)
    inv_l = pl.reciprocal(l, approx=True)             # EUP slot, frees VALU
    inv_l = inv_l * (2.0 - l * inv_l)                 # one Newton step -> ~f32 exact
    p = e * inv_l                                     # (tq, N) attention rows

    attn_ref[0, 0] = p.astype(attn_ref.dtype)         # lane-dense (tq, N) store

    ctx = jnp.dot(p.astype(v.dtype), v,
                  preferred_element_type=jnp.float32)                       # (tq, d_v)
    # fused fc_o: accumulate this head's contribution (head axis is the reduction)
    acc_ref[...] += jnp.dot(ctx.astype(wo_ref.dtype), wo_ref[0],
                            preferred_element_type=jnp.float32)             # (tq, d_o)

    @pl.when(h == pl.num_programs(2) - 1)
    def _():
        out_ref[0] = (acc_ref[...] + bo_ref[...]).astype(out_ref.dtype)


def mha_attention_fc_o(qp, kp, vp, wo_h, b_o, out_dtype, *, d_k, tq, vmem_limit):
    """qp/kp/vp: head-major (H, B, N, d).  wo_h: (H, d_v, d_o).  b_o: (1, d_o).

    Returns:
      attn: (H, B, N, N)  -- reshapes for free to (H*B, N, N) head-major
      out:  (B, N, d_o)   -- fc_o already applied (per-head contributions summed)
    """
    H, B, N, _ = qp.shape
    d_v = vp.shape[-1]
    d_o = wo_h.shape[-1]
    tq = _pick_tile(N, tq, 8)
    inv_scale = float(1.0 / np.power(d_k, 0.5))
    kernel = functools.partial(_mha_fco_kernel, inv_scale=inv_scale)
    # NOTE: if attn writeback ever shows up as the bottleneck, the attn out_spec can
    # take pipeline_mode=pl.Buffered(3) now that the per-step block is only (tq, N).
    return pl.pallas_call(
        kernel,
        out_shape=(
            jax.ShapeDtypeStruct((H, B, N, N), out_dtype),
            jax.ShapeDtypeStruct((B, N, d_o), out_dtype),
        ),
        grid_spec=pltpu.PrefetchScalarGridSpec(
            num_scalar_prefetch=0,
            grid=(B, N // tq, H),        # head innermost: fc_o reduction axis
            in_specs=[
                pl.BlockSpec((1, 1, tq, d_k), lambda b, qi, h: (h, b, qi, 0)),
                pl.BlockSpec((1, 1, N, d_k), lambda b, qi, h: (h, b, 0, 0)),
                pl.BlockSpec((1, 1, N, d_v), lambda b, qi, h: (h, b, 0, 0)),
                pl.BlockSpec((1, d_v, d_o), lambda b, qi, h: (h, 0, 0)),
                pl.BlockSpec((1, d_o), lambda b, qi, h: (0, 0)),
            ],
            out_specs=(
                pl.BlockSpec((1, 1, tq, N), lambda b, qi, h: (h, b, qi, 0)),
                pl.BlockSpec((1, tq, d_o), lambda b, qi, h: (b, qi, 0)),
            ),
            scratch_shapes=[pltpu.VMEM((tq, d_o), jnp.float32)],
        ),
        compiler_params=pltpu.CompilerParams(
            dimension_semantics=("parallel", "parallel", "arbitrary"),
            vmem_limit_bytes=vmem_limit,
        ),
    )(qp, kp, vp, wo_h, b_o)


# ---------------------------------------------------------------------------
# Parameter init (deterministic, mirrors init_parameters: U(-1/sqrt(fan), +))
# ---------------------------------------------------------------------------

def init_params(key, n_head, d_k, d_v, d_x, d_o):
    ks = jax.random.split(key, 11)

    def u(k, shape, fan):
        s = 1.0 / np.sqrt(fan)
        return jax.random.uniform(k, shape, jnp.float32, -s, s)

    return {
        "wq": u(ks[0], (d_x, d_k), d_k),
        "wk": u(ks[1], (d_x, d_k), d_k),
        "wv": u(ks[2], (d_x, d_v), d_v),
        # Linear weights stored (in, out); biases (out,)
        "fc_q_w": u(ks[3], (d_k, n_head * d_k), n_head * d_k),
        "fc_q_b": u(ks[4], (n_head * d_k,), n_head * d_k),
        "fc_k_w": u(ks[5], (d_k, n_head * d_k), n_head * d_k),
        "fc_k_b": u(ks[6], (n_head * d_k,), n_head * d_k),
        "fc_v_w": u(ks[7], (d_v, n_head * d_v), n_head * d_v),
        "fc_v_b": u(ks[8], (n_head * d_v,), n_head * d_v),
        "fc_o_w": u(ks[9], (n_head * d_v, d_o), d_o),
        "fc_o_b": u(ks[10], (d_o,), d_o),
    }


# ---------------------------------------------------------------------------
# Forward pass: 2 Pallas calls (head-major QKV projection, attention+fc_o)
# ---------------------------------------------------------------------------

def self_attention_forward(params, x, n_head, d_k, d_v, compute_dtype=None):
    B, N, d_x = x.shape
    out_dtype = x.dtype
    cd = out_dtype if compute_dtype is None else compute_dtype   # bf16 MXU operands opt-in
    vmem_limit, tm_t, tk_t, tq_t = _hw_config()

    # Algebraic fusion: (x @ w) @ fc_w == x @ (w @ fc_w).  Composed once on
    # parameter-sized tensors (cheap, wrapper-side XLA), then rearranged to a
    # head-major per-head [Wq_h | Wk_h | Wv_h] layout so the projection kernel
    # indexes heads from the grid and emits head-major q/k/v directly.
    def _head_major(w_eff, b, d):
        w = w_eff.reshape(d_x, n_head, d).transpose(1, 0, 2)     # (H, d_x, d)
        return w, b.reshape(n_head, d)

    wq_h, bq_h = _head_major(params["wq"] @ params["fc_q_w"], params["fc_q_b"], d_k)
    wk_h, bk_h = _head_major(params["wk"] @ params["fc_k_w"], params["fc_k_b"], d_k)
    wv_h, bv_h = _head_major(params["wv"] @ params["fc_v_w"], params["fc_v_b"], d_v)
    w_qkv_h = jnp.concatenate([wq_h, wk_h, wv_h], axis=-1).astype(cd)        # (H, d_x, D_h)
    b_qkv_h = jnp.concatenate([bq_h, bk_h, bv_h], axis=-1)[:, None, :]
    b_qkv_h = b_qkv_h.astype(jnp.float32)                                    # (H, 1, D_h)

    x2 = x.reshape(B * N, d_x).astype(cd)
    qp, kp, vp = qkv_projection(x2, w_qkv_h, b_qkv_h, d_k, d_v, cd,
                                tm=tm_t, tk=tk_t, vmem_limit=vmem_limit)
    qp = qp.reshape(n_head, B, N, d_k)        # free reshapes (already head-major)
    kp = kp.reshape(n_head, B, N, d_k)
    vp = vp.reshape(n_head, B, N, d_v)

    wo_h = params["fc_o_w"].reshape(n_head, d_v, -1).astype(cd)              # (H, d_v, d_o)
    b_o = params["fc_o_b"].reshape(1, -1).astype(jnp.float32)                # (1, d_o)

    attn_hb, out = mha_attention_fc_o(qp, kp, vp, wo_h, b_o, out_dtype,
                                      d_k=d_k, tq=tq_t, vmem_limit=vmem_limit)
    attn = attn_hb.reshape(n_head * B, N, N)  # free (already head-major)
    return attn, out


# ---------------------------------------------------------------------------
# Pure-JAX reference (unfused path) for verification
# ---------------------------------------------------------------------------

def reference_forward(params, x, n_head, d_k, d_v):
    B, N, _ = x.shape
    q = x @ params["wq"]
    k = x @ params["wk"]
    v = x @ params["wv"]
    qp = q @ params["fc_q_w"] + params["fc_q_b"]
    kp = k @ params["fc_k_w"] + params["fc_k_b"]
    vp = v @ params["fc_v_w"] + params["fc_v_b"]

    def split_heads(t, d):
        return t.reshape(B, N, n_head, d).transpose(2, 0, 1, 3).reshape(n_head * B, N, d)

    qh, kh, vh = split_heads(qp, d_k), split_heads(kp, d_k), split_heads(vp, d_v)
    s = jnp.einsum("gqd,gkd->gqk", qh, kh) / np.power(d_k, 0.5)
    attn = jax.nn.softmax(s, axis=-1)
    ctx = jnp.einsum("gqk,gkd->gqd", attn, vh)
    ctx_m = ctx.reshape(n_head, B, N, d_v).transpose(1, 2, 0, 3).reshape(B, N, n_head * d_v)
    out = ctx_m @ params["fc_o_w"] + params["fc_o_b"]
    return attn, out


# ---------------------------------------------------------------------------

if __name__ == "__main__":
    n_head, d_k, d_v, d_x, d_o = 4, 16, 16, 32, 32
    batch, seq = 2, 8

    key = jax.random.PRNGKey(0)
    pkey, xkey = jax.random.split(key)
    params = init_params(pkey, n_head, d_k, d_v, d_x, d_o)
    x = jax.random.normal(xkey, (batch, seq, d_x), jnp.float32)

    fwd = jax.jit(functools.partial(self_attention_forward,
                                    n_head=n_head, d_k=d_k, d_v=d_v))
    attn, out = fwd(params, x)
    jax.block_until_ready((attn, out))

    attn_ref, out_ref = reference_forward(params, x, n_head, d_k, d_v)
    # Slightly relaxed rtol: weight pre-composition reassociates the fp summation order.
    np.testing.assert_allclose(np.asarray(attn), np.asarray(attn_ref), rtol=1e-4, atol=1e-5)
    np.testing.assert_allclose(np.asarray(out), np.asarray(out_ref), rtol=1e-4, atol=1e-5)

    assert attn.shape == (n_head * batch, seq, seq)
    assert out.shape == (batch, seq, d_o)
    print("KERNEL_OK")
</pallas_src>

<mosaic_0001>
module attributes {stable_mosaic.version = 11 : i64} {
  func.func @_mha_fco_kernel(%arg0: i32, %arg1: i32, %arg2: i32, %arg3: memref<1x1x8x16xf32, #tpu.memory_space<vmem>>, %arg4: memref<1x1x8x16xf32, #tpu.memory_space<vmem>>, %arg5: memref<1x1x8x16xf32, #tpu.memory_space<vmem>>, %arg6: memref<1x16x32xf32, #tpu.memory_space<vmem>>, %arg7: memref<1x32xf32, #tpu.memory_space<vmem>>, %arg8: memref<1x1x8x8xf32, #tpu.memory_space<vmem>>, %arg9: memref<1x8x32xf32, #tpu.memory_space<vmem>>, %arg10: memref<8x32xf32, #tpu.memory_space<vmem>>) attributes {dimension_semantics = [#tpu.dimension_semantics<parallel>, #tpu.dimension_semantics<parallel>, #tpu.dimension_semantics<arbitrary>], iteration_bounds = array<i64: 2, 1, 4>, scalar_prefetch = 0 : i64, scratch_operands = 1 : i64, tpu.core_type = #tpu.core_type<tc>, window_params = [{transform_indices = @transform_0, window_bounds = array<i64: 1, 1, 8, 16>}, {transform_indices = @transform_1, window_bounds = array<i64: 1, 1, 8, 16>}, {transform_indices = @transform_2, window_bounds = array<i64: 1, 1, 8, 16>}, {transform_indices = @transform_3, window_bounds = array<i64: 1, 16, 32>}, {pipeline_mode = #tpu.pipeline_mode<synchronous>, transform_indices = @transform_4, window_bounds = array<i64: 1, 32>}, {transform_indices = @transform_5, window_bounds = array<i64: 1, 1, 8, 8>}, {transform_indices = @transform_6, window_bounds = array<i64: 1, 8, 32>}]} {
    %c0_i32 = arith.constant 0 : i32
    %0 = arith.cmpi eq, %arg2, %c0_i32 : i32
    %1 = arith.extui %0 : i1 to i32
    %c0_i32_0 = arith.constant 0 : i32
    %2 = arith.cmpi ne, %1, %c0_i32_0 : i32
    scf.if %2 {
      %cst_30 = arith.constant 0.000000e+00 : f32
      %39 = vector.broadcast %cst_30 : f32 to vector<8x32xf32>
      %c0_31 = arith.constant 0 : index
      %c0_32 = arith.constant 0 : index
      %40 = vector.load %arg10[%c0_31, %c0_32] : memref<8x32xf32, #tpu.memory_space<vmem>>, vector<8x32xf32>
      tpu.vector_store %arg10[%c0_31, %c0_32], %39 {strides = array<i32>} : memref<8x32xf32, #tpu.memory_space<vmem>>, vector<8x32xf32>,
    } else {
    }
    %c0 = arith.constant 0 : index
    %c0_1 = arith.constant 0 : index
    %c0_2 = arith.constant 0 : index
    %c0_3 = arith.constant 0 : index
    %3 = vector.load %arg3[%c0, %c0_1, %c0_2, %c0_3] : memref<1x1x8x16xf32, #tpu.memory_space<vmem>>, vector<1x1x8x16xf32>
    %4 = vector.shape_cast %3 : vector<1x1x8x16xf32> to vector<8x16xf32>
    %c0_4 = arith.constant 0 : index
    %c0_5 = arith.constant 0 : index
    %c0_6 = arith.constant 0 : index
    %c0_7 = arith.constant 0 : index
    %5 = vector.load %arg4[%c0_4, %c0_5, %c0_6, %c0_7] : memref<1x1x8x16xf32, #tpu.memory_space<vmem>>, vector<1x1x8x16xf32>
    %6 = vector.shape_cast %5 : vector<1x1x8x16xf32> to vector<8x16xf32>
    %c0_8 = arith.constant 0 : index
    %c0_9 = arith.constant 0 : index
    %c0_10 = arith.constant 0 : index
    %c0_11 = arith.constant 0 : index
    %7 = vector.load %arg5[%c0_8, %c0_9, %c0_10, %c0_11] : memref<1x1x8x16xf32, #tpu.memory_space<vmem>>, vector<1x1x8x16xf32>
    %8 = vector.shape_cast %7 : vector<1x1x8x16xf32> to vector<8x16xf32>
    %cst = arith.constant dense<0.000000e+00> : vector<8x8xf32>
    %9 = tpu.matmul %4, %6, %cst {dimension_numbers = #tpu.dot_dimension_numbers<[1], [1], [0], [0], [0, 0, 1, 0], [], []>} : vector<8x16xf32>, vector<8x16xf32>, vector<8x8xf32> -> vector<8x8xf32>
    %cst_12 = arith.constant 2.500000e-01 : f32
    %10 = vector.broadcast %cst_12 : f32 to vector<8x8xf32>
    %11 = arith.mulf %9, %10 : vector<8x8xf32>
    %cst_13 = arith.constant dense<0xFF800000> : vector<8xf32>
    %12 = vector.multi_reduction <maximumf>, %11, %cst_13 [1] : vector<8x8xf32> to vector<8xf32>
    %13 = vector.shape_cast %12 : vector<8xf32> to vector<8x1xf32>
    %14 = vector.broadcast %13 : vector<8x1xf32> to vector<8x8xf32>
    %15 = arith.subf %11, %14 : vector<8x8xf32>
    %16 = math.exp %15 : vector<8x8xf32>
    %cst_14 = arith.constant dense<0.000000e+00> : vector<8xf32>
    %17 = vector.multi_reduction <add>, %16, %cst_14 [1] : vector<8x8xf32> to vector<8xf32>
    %18 = vector.shape_cast %17 : vector<8xf32> to vector<8x1xf32>
    %19 = tpu.reciprocal %18 {approx = true} : vector<8x1xf32> -> vector<8x1xf32>
    %20 = arith.mulf %18, %19 : vector<8x1xf32>
    %cst_15 = arith.constant 2.000000e+00 : f32
    %21 = vector.broadcast %cst_15 : f32 to vector<8x1xf32>
    %22 = arith.subf %21, %20 : vector<8x1xf32>
    %23 = arith.mulf %19, %22 : vector<8x1xf32>
    %24 = vector.broadcast %23 : vector<8x1xf32> to vector<8x8xf32>
    %25 = arith.mulf %16, %24 : vector<8x8xf32>
    %c0_16 = arith.constant 0 : index
    %c0_17 = arith.constant 0 : index
    %c0_18 = arith.constant 0 : index
    %c0_19 = arith.constant 0 : index
    %26 = vector.load %arg8[%c0_16, %c0_17, %c0_18, %c0_19] : memref<1x1x8x8xf32, #tpu.memory_space<vmem>>, vector<1x1x8x8xf32>
    %27 = vector.shape_cast %26 : vector<1x1x8x8xf32> to vector<8x8xf32>
    %28 = vector.shape_cast %25 : vector<8x8xf32> to vector<1x1x8x8xf32>
    tpu.vector_store %arg8[%c0_16, %c0_17, %c0_18, %c0_19], %28 {strides = array<i32>} : memref<1x1x8x8xf32, #tpu.memory_space<vmem>>, vector<1x1x8x8xf32>,
    %cst_20 = arith.constant dense<0.000000e+00> : vector<8x16xf32>
    %29 = tpu.matmul %25, %8, %cst_20 {dimension_numbers = #tpu.dot_dimension_numbers<[1], [0], [0], [1], [0, 0, 1, 1], [], []>} : vector<8x8xf32>, vector<8x16xf32>, vector<8x16xf32> -> vector<8x16xf32>
    %c0_21 = arith.constant 0 : index
    %c0_22 = arith.constant 0 : index
    %30 = vector.load %arg10[%c0_21, %c0_22] : memref<8x32xf32, #tpu.memory_space<vmem>>, vector<8x32xf32>
    %c0_23 = arith.constant 0 : index
    %c0_24 = arith.constant 0 : index
    %c0_25 = arith.constant 0 : index
    %31 = vector.load %arg6[%c0_23, %c0_24, %c0_25] : memref<1x16x32xf32, #tpu.memory_space<vmem>>, vector<1x16x32xf32>
    %32 = vector.shape_cast %31 : vector<1x16x32xf32> to vector<16x32xf32>
    %cst_26 = arith.constant dense<0.000000e+00> : vector<8x32xf32>
    %33 = tpu.matmul %29, %32, %cst_26 {dimension_numbers = #tpu.dot_dimension_numbers<[1], [0], [0], [1], [0, 0, 1, 1], [], []>} : vector<8x16xf32>, vector<16x32xf32>, vector<8x32xf32> -> vector<8x32xf32>
    %34 = arith.addf %30, %33 : vector<8x32xf32>
    %c0_27 = arith.constant 0 : index
    %c0_28 = arith.constant 0 : index
    %35 = vector.load %arg10[%c0_27, %c0_28] : memref<8x32xf32, #tpu.memory_space<vmem>>, vector<8x32xf32>
    tpu.vector_store %arg10[%c0_27, %c0_28], %34 {strides = array<i32>} : memref<8x32xf32, #tpu.memory_space<vmem>>, vector<8x32xf32>,
    %c3_i32 = arith.constant 3 : i32
    %36 = arith.cmpi eq, %arg2, %c3_i32 : i32
    %37 = arith.extui %36 : i1 to i32
    %c0_i32_29 = arith.constant 0 : i32
    %38 = arith.cmpi ne, %37, %c0_i32_29 : i32
    scf.if %38 {
      %c0_30 = arith.constant 0 : index
      %c0_31 = arith.constant 0 : index
      %39 = vector.load %arg10[%c0_30, %c0_31] : memref<8x32xf32, #tpu.memory_space<vmem>>, vector<8x32xf32>
      %c0_32 = arith.constant 0 : index
      %c0_33 = arith.constant 0 : index
      %40 = vector.load %arg7[%c0_32, %c0_33] : memref<1x32xf32, #tpu.memory_space<vmem>>, vector<1x32xf32>
      %41 = vector.broadcast %40 : vector<1x32xf32> to vector<8x32xf32>
      %42 = arith.addf %39, %41 : vector<8x32xf32>
      %c0_34 = arith.constant 0 : index
      %c0_35 = arith.constant 0 : index
      %c0_36 = arith.constant 0 : index
      %43 = vector.load %arg9[%c0_34, %c0_35, %c0_36] : memref<1x8x32xf32, #tpu.memory_space<vmem>>, vector<1x8x32xf32>
      %44 = vector.shape_cast %43 : vector<1x8x32xf32> to vector<8x32xf32>
      %45 = vector.shape_cast %42 : vector<8x32xf32> to vector<1x8x32xf32>
      tpu.vector_store %arg9[%c0_34, %c0_35, %c0_36], %45 {strides = array<i32>} : memref<1x8x32xf32, #tpu.memory_space<vmem>>, vector<1x8x32xf32>,
    } else {
    }
    return
  }
  func.func @transform_0(%arg0: i32, %arg1: i32, %arg2: i32) -> (i32, i32, i32, i32) {
    %c0_i32 = arith.constant 0 : i32
    %c0_i32_0 = arith.constant 0 : i32
    return %arg2, %arg0, %arg1, %c0_i32 : i32, i32, i32, i32
  }
  func.func @transform_1(%arg0: i32, %arg1: i32, %arg2: i32) -> (i32, i32, i32, i32) {
    %c0_i32 = arith.constant 0 : i32
    %c0_i32_0 = arith.constant 0 : i32
    %c0_i32_1 = arith.constant 0 : i32
    return %arg2, %arg0, %c0_i32, %c0_i32_0 : i32, i32, i32, i32
  }
  func.func @transform_2(%arg0: i32, %arg1: i32, %arg2: i32) -> (i32, i32, i32, i32) {
    %c0_i32 = arith.constant 0 : i32
    %c0_i32_0 = arith.constant 0 : i32
    %c0_i32_1 = arith.constant 0 : i32
    return %arg2, %arg0, %c0_i32, %c0_i32_0 : i32, i32, i32, i32
  }
  func.func @transform_3(%arg0: i32, %arg1: i32, %arg2: i32) -> (i32, i32, i32) {
    %c0_i32 = arith.constant 0 : i32
    %c0_i32_0 = arith.constant 0 : i32
    %c0_i32_1 = arith.constant 0 : i32
    return %arg2, %c0_i32, %c0_i32_0 : i32, i32, i32
  }
  func.func @transform_4(%arg0: i32, %arg1: i32, %arg2: i32) -> (i32, i32) {
    %c0_i32 = arith.constant 0 : i32
    %c0_i32_0 = arith.constant 0 : i32
    %c0_i32_1 = arith.constant 0 : i32
    return %c0_i32, %c0_i32_0 : i32, i32
  }
  func.func @transform_5(%arg0: i32, %arg1: i32, %arg2: i32) -> (i32, i32, i32, i32) {
    %c0_i32 = arith.constant 0 : i32
    %c0_i32_0 = arith.constant 0 : i32
    return %arg2, %arg0, %arg1, %c0_i32 : i32, i32, i32, i32
  }
  func.func @transform_6(%arg0: i32, %arg1: i32, %arg2: i32) -> (i32, i32, i32) {
    %c0_i32 = arith.constant 0 : i32
    %c0_i32_0 = arith.constant 0 : i32
    return %arg0, %arg1, %c0_i32 : i32, i32, i32
  }
}

module attributes {stable_mosaic.version = 11 : i64} {
  func.func @_qkv_proj_kernel(%arg0: i32, %arg1: i32, %arg2: i32, %arg3: memref<16x32xf32, #tpu.memory_space<vmem>>, %arg4: memref<1x32x48xf32, #tpu.memory_space<vmem>>, %arg5: memref<1x1x48xf32, #tpu.memory_space<vmem>>, %arg6: memref<1x16x16xf32, #tpu.memory_space<vmem>>, %arg7: memref<1x16x16xf32, #tpu.memory_space<vmem>>, %arg8: memref<1x16x16xf32, #tpu.memory_space<vmem>>, %arg9: memref<16x48xf32, #tpu.memory_space<vmem>>) attributes {dimension_semantics = [#tpu.dimension_semantics<parallel>, #tpu.dimension_semantics<parallel>, #tpu.dimension_semantics<arbitrary>], iteration_bounds = array<i64: 1, 4, 1>, scalar_prefetch = 0 : i64, scratch_operands = 1 : i64, tpu.core_type = #tpu.core_type<tc>, window_params = [{transform_indices = @transform_0, window_bounds = array<i64: 16, 32>}, {transform_indices = @transform_1, window_bounds = array<i64: 1, 32, 48>}, {transform_indices = @transform_2, window_bounds = array<i64: 1, 1, 48>}, {transform_indices = @transform_3, window_bounds = array<i64: 1, 16, 16>}, {transform_indices = @transform_4, window_bounds = array<i64: 1, 16, 16>}, {transform_indices = @transform_5, window_bounds = array<i64: 1, 16, 16>}]} {
    %c0_i32 = arith.constant 0 : i32
    %0 = arith.cmpi eq, %arg2, %c0_i32 : i32
    %1 = arith.extui %0 : i1 to i32
    %c0_i32_0 = arith.constant 0 : i32
    %2 = arith.cmpi ne, %1, %c0_i32_0 : i32
    scf.if %2 {
      %cst_11 = arith.constant 0.000000e+00 : f32
      %13 = vector.broadcast %cst_11 : f32 to vector<16x48xf32>
      %c0_12 = arith.constant 0 : index
      %c0_13 = arith.constant 0 : index
      %14 = vector.load %arg9[%c0_12, %c0_13] : memref<16x48xf32, #tpu.memory_space<vmem>>, vector<16x48xf32>
      tpu.vector_store %arg9[%c0_12, %c0_13], %13 {strides = array<i32>} : memref<16x48xf32, #tpu.memory_space<vmem>>, vector<16x48xf32>,
    } else {
    }
    %c0 = arith.constant 0 : index
    %c0_1 = arith.constant 0 : index
    %3 = vector.load %arg9[%c0, %c0_1] : memref<16x48xf32, #tpu.memory_space<vmem>>, vector<16x48xf32>
    %c0_2 = arith.constant 0 : index
    %c0_3 = arith.constant 0 : index
    %4 = vector.load %arg3[%c0_2, %c0_3] : memref<16x32xf32, #tpu.memory_space<vmem>>, vector<16x32xf32>
    %c0_4 = arith.constant 0 : index
    %c0_5 = arith.constant 0 : index
    %c0_6 = arith.constant 0 : index
    %5 = vector.load %arg4[%c0_4, %c0_5, %c0_6] : memref<1x32x48xf32, #tpu.memory_space<vmem>>, vector<1x32x48xf32>
    %6 = vector.shape_cast %5 : vector<1x32x48xf32> to vector<32x48xf32>
    %cst = arith.constant dense<0.000000e+00> : vector<16x48xf32>
    %7 = tpu.matmul %4, %6, %cst {dimension_numbers = #tpu.dot_dimension_numbers<[1], [0], [0], [1], [0, 0, 1, 1], [], []>} : vector<16x32xf32>, vector<32x48xf32>, vector<16x48xf32> -> vector<16x48xf32>
    %8 = arith.addf %3, %7 : vector<16x48xf32>
    %c0_7 = arith.constant 0 : index
    %c0_8 = arith.constant 0 : index
    %9 = vector.load %arg9[%c0_7, %c0_8] : memref<16x48xf32, #tpu.memory_space<vmem>>, vector<16x48xf32>
    tpu.vector_store %arg9[%c0_7, %c0_8], %8 {strides = array<i32>} : memref<16x48xf32, #tpu.memory_space<vmem>>, vector<16x48xf32>,
    %c0_i32_9 = arith.constant 0 : i32
    %10 = arith.cmpi eq, %arg2, %c0_i32_9 : i32
    %11 = arith.extui %10 : i1 to i32
    %c0_i32_10 = arith.constant 0 : i32
    %12 = arith.cmpi ne, %11, %c0_i32_10 : i32
    scf.if %12 {
      %c0_11 = arith.constant 0 : index
      %c0_12 = arith.constant 0 : index
      %13 = vector.load %arg9[%c0_11, %c0_12] : memref<16x48xf32, #tpu.memory_space<vmem>>, vector<16x48xf32>
      %c0_13 = arith.constant 0 : index
      %c0_14 = arith.constant 0 : index
      %c0_15 = arith.constant 0 : index
      %14 = vector.load %arg5[%c0_13, %c0_14, %c0_15] : memref<1x1x48xf32, #tpu.memory_space<vmem>>, vector<1x1x48xf32>
      %15 = vector.shape_cast %14 : vector<1x1x48xf32> to vector<1x48xf32>
      %16 = vector.broadcast %15 : vector<1x48xf32> to vector<16x48xf32>
      %17 = arith.addf %13, %16 : vector<16x48xf32>
      %18 = vector.extract_strided_slice %17 {offsets = [0, 0], sizes = [16, 16], strides = [1, 1]} : vector<16x48xf32> to vector<16x16xf32>
      %c0_16 = arith.constant 0 : index
      %c0_17 = arith.constant 0 : index
      %c0_18 = arith.constant 0 : index
      %19 = vector.load %arg6[%c0_16, %c0_17, %c0_18] : memref<1x16x16xf32, #tpu.memory_space<vmem>>, vector<1x16x16xf32>
      %20 = vector.shape_cast %19 : vector<1x16x16xf32> to vector<16x16xf32>
      %21 = vector.shape_cast %18 : vector<16x16xf32> to vector<1x16x16xf32>
      tpu.vector_store %arg6[%c0_16, %c0_17, %c0_18], %21 {strides = array<i32>} : memref<1x16x16xf32, #tpu.memory_space<vmem>>, vector<1x16x16xf32>,
      %22 = vector.extract_strided_slice %17 {offsets = [0, 16], sizes = [16, 16], strides = [1, 1]} : vector<16x48xf32> to vector<16x16xf32>
      %c0_19 = arith.constant 0 : index
      %c0_20 = arith.constant 0 : index
      %c0_21 = arith.constant 0 : index
      %23 = vector.load %arg7[%c0_19, %c0_20, %c0_21] : memref<1x16x16xf32, #tpu.memory_space<vmem>>, vector<1x16x16xf32>
      %24 = vector.shape_cast %23 : vector<1x16x16xf32> to vector<16x16xf32>
      %25 = vector.shape_cast %22 : vector<16x16xf32> to vector<1x16x16xf32>
      tpu.vector_store %arg7[%c0_19, %c0_20, %c0_21], %25 {strides = array<i32>} : memref<1x16x16xf32, #tpu.memory_space<vmem>>, vector<1x16x16xf32>,
      %26 = vector.extract_strided_slice %17 {offsets = [0, 32], sizes = [16, 16], strides = [1, 1]} : vector<16x48xf32> to vector<16x16xf32>
      %c0_22 = arith.constant 0 : index
      %c0_23 = arith.constant 0 : index
      %c0_24 = arith.constant 0 : index
      %27 = vector.load %arg8[%c0_22, %c0_23, %c0_24] : memref<1x16x16xf32, #tpu.memory_space<vmem>>, vector<1x16x16xf32>
      %28 = vector.shape_cast %27 : vector<1x16x16xf32> to vector<16x16xf32>
      %29 = vector.shape_cast %26 : vector<16x16xf32> to vector<1x16x16xf32>
      tpu.vector_store %arg8[%c0_22, %c0_23, %c0_24], %29 {strides = array<i32>} : memref<1x16x16xf32, #tpu.memory_space<vmem>>, vector<1x16x16xf32>,
    } else {
    }
    return
  }
  func.func @transform_0(%arg0: i32, %arg1: i32, %arg2: i32) -> (i32, i32) {
    %c0_i32 = arith.constant 0 : i32
    return %arg0, %arg2 : i32, i32
  }
  func.func @transform_1(%arg0: i32, %arg1: i32, %arg2: i32) -> (i32, i32, i32) {
    %c0_i32 = arith.constant 0 : i32
    %c0_i32_0 = arith.constant 0 : i32
    return %arg1, %arg2, %c0_i32 : i32, i32, i32
  }
  func.func @transform_2(%arg0: i32, %arg1: i32, %arg2: i32) -> (i32, i32, i32) {
    %c0_i32 = arith.constant 0 : i32
    %c0_i32_0 = arith.constant 0 : i32
    %c0_i32_1 = arith.constant 0 : i32
    return %arg1, %c0_i32, %c0_i32_0 : i32, i32, i32
  }
  func.func @transform_3(%arg0: i32, %arg1: i32, %arg2: i32) -> (i32, i32, i32) {
    %c0_i32 = arith.constant 0 : i32
    %c0_i32_0 = arith.constant 0 : i32
    return %arg1, %arg0, %c0_i32 : i32, i32, i32
  }
  func.func @transform_4(%arg0: i32, %arg1: i32, %arg2: i32) -> (i32, i32, i32) {
    %c0_i32 = arith.constant 0 : i32
    %c0_i32_0 = arith.constant 0 : i32
    return %arg1, %arg0, %c0_i32 : i32, i32, i32
  }
  func.func @transform_5(%arg0: i32, %arg1: i32, %arg2: i32) -> (i32, i32, i32) {
    %c0_i32 = arith.constant 0 : i32
    %c0_i32_0 = arith.constant 0 : i32
    return %arg1, %arg0, %c0_i32 : i32, i32, i32
  }
}

</mosaic_0001>

<llo_original>
// kernel: self_attention_forward.2
$region0: #{self_attention_forward.2}
  #allocation0 [shape = 'u32[]', space=smem, size = 0x4, offset = 0x4, fixed_abs, tag = 'smem constant byte address 0x4 - core index']
  #allocation1 [shape = 'u32[72,128]{1,0:T(1,128)}', space=vmem, size = 0x9000, scoped, tag = 'internal scratch']
  #allocation2 [shape = 'f32[16,48]{1,0:T(8,128)}', space=vmem, size = 0x2000, scoped, tag = 'scratch operand']
  %s0 = inlined_call_operand.vmem [shape: f32[16,32], index: 0, kind: input, shape index: {}]
  %s1 = inlined_call_operand.vmem [shape: f32[4,32,48], index: 1, kind: input, shape index: {}]
  %s2 = inlined_call_operand.vmem [shape: f32[4,1,48], index: 2, kind: input, shape index: {}]
  %s3 = inlined_call_operand.vmem [shape: f32[4,16,16], index: 3, kind: output, shape index: {0}]
  %s4 = inlined_call_operand.vmem [shape: f32[4,16,16], index: 4, kind: output, shape index: {1}]
  %s5 = inlined_call_operand.vmem [shape: f32[4,16,16], index: 5, kind: output, shape index: {2}]
  %6 = xla_tuple %s3, %s4, %s5
  %s7 = sld [smem:[#allocation0]]
  $region69: #{self_attention_forward.2} parent=0
    _
  %s9 = ssub.s32 1, %s7
  %s10 = scalar_select 0, %s9, %s7
  loop: start=0, step=1, limit=6
  $region2: #{self_attention_forward.2} parent=0 // loop_pre_header
    _
  $region3: #{self_attention_forward.2} parent=0 // loop_header
    %s12 = sphi 0, %s16
    %p13 = scmp.ge.s32.totalorder %s12, 6
    %s19 = sphi 0, %s38
    %s20 = sphi 0, %s34
    %s21 = sphi 0, %s30
    %s22 = sphi 0, %s19
    %s23 = sphi 0, %s20
    %s24 = sphi 0, %s21
    %s25 = sphi 0, %s22
    %s26 = sphi 0, %s23
    %s27 = sphi 0, %s24
    %s43 = sphi 0, %s45
    %s46 = sphi 0, %s43
    %s47 = sphi 0, %s46
    %s63 = sphi 0, %s47
    %s71 = sphi 0, %s73
    %s74 = sphi 0, %s71
    %s75 = sphi 0, %s74
    %s91 = sphi 0, %s75
    %s97 = sphi 0, %s99
    %s100 = sphi 0, %s97
    %s101 = sphi 0, %s100
    %s117 = sphi 0, %s101
    %s125 = sphi 0, %s127
    %s128 = sphi 0, %s125
    %s129 = sphi 0, %s128
    %s145 = sphi 0, %s129
    %s153 = sphi 0, %s155
    %s156 = sphi 0, %s153
    %s157 = sphi 0, %s156
    %s173 = sphi 0, %s157
    %s181 = sphi 0, %s183
    %s184 = sphi 0, %s181
    %s185 = sphi 0, %s184
    %s201 = sphi 0, %s185
  $region4: #{self_attention_forward.2} parent=0 // loop_header_branch
    %15 = sbr.rel (%p13) target = $region8
  $region5: #{self_attention_forward.2} parent=0 // loop_body
    %s17 = ssub.s32 %s12, 1
    %s18 = ssub.s32 %s12, 2
    %s28 = sadd.s32 1, %s21
    %p29 = scmp.ge.s32.totalorder %s28, 1
    %s30 = scalar_select %p29, 0, %s28
    %s31 = sadd.s32 1, %s20
    %s32 = scalar_select %p29, %s31, %s20
    %p33 = scmp.ge.s32.totalorder %s32, 4
    %s34 = scalar_select %p33, 0, %s32
    %s35 = sadd.s32 1, %s19
    %s36 = scalar_select %p33, %s35, %s19
    %p37 = scmp.ge.s32.totalorder %s36, 1
    %s38 = scalar_select %p37, 0, %s36
    %s39 = ssub.s32 %s19, %s38
    %s40 = ssub.s32 %s21, %s30
    %s41 = sor.u32 %s39, %s40
    %p42 = scmp.eq.s32.totalorder %s41, 0
    %s44 = sadd.s32 %s43, 1
    %s45 = scalar_select %p42, %s43, %s44
    %p48 = pneg %p42
    %p49 = scmp.eq.s32.totalorder %s12, 3
    %p50 = por %p48, %p49
    %p51 = scmp.ne.s32.totalorder %s43, %s46
    %p52 = scmp.eq.s32.totalorder %s12, 0
    %p53 = por %p51, %p52
    %p54 = scmp.ne.s32.totalorder %s43, %s46
    %p55 = scmp.eq.s32.totalorder %s17, 3
    %p56 = por %p54, %p55
    %p57 = scmp.ne.s32.totalorder %s46, %s47
    %p58 = scmp.eq.s32.totalorder %s17, 0
    %p59 = por %p57, %p58
    %p60 = scmp.ne.s32.totalorder %s46, %s47
    %p61 = scmp.eq.s32.totalorder %s18, 3
    %p62 = por %p60, %p61
    %p64 = scmp.ne.s32.totalorder %s47, %s63
    %p65 = scmp.eq.s32.totalorder %s18, 0
    %p66 = por %p64, %p65
    %s67 = ssub.s32 %s20, %s34
    %s68 = ssub.s32 %s21, %s30
    %s69 = sor.u32 %s67, %s68
    %p70 = scmp.eq.s32.totalorder %s69, 0
    %s72 = sadd.s32 %s71, 1
    %s73 = scalar_select %p70, %s71, %s72
    %p76 = pneg %p70
    %p77 = scmp.eq.s32.totalorder %s12, 3
    %p78 = por %p76, %p77
    %p79 = scmp.ne.s32.totalorder %s71, %s74
    %p80 = scmp.eq.s32.totalorder %s12, 0
    %p81 = por %p79, %p80
    %p82 = scmp.ne.s32.totalorder %s71, %s74
    %p83 = scmp.eq.s32.totalorder %s17, 3
    %p84 = por %p82, %p83
    %p85 = scmp.ne.s32.totalorder %s74, %s75
    %p86 = scmp.eq.s32.totalorder %s17, 0
    %p87 = por %p85, %p86
    %p88 = scmp.ne.s32.totalorder %s74, %s75
    %p89 = scmp.eq.s32.totalorder %s18, 3
    %p90 = por %p88, %p89
    %p92 = scmp.ne.s32.totalorder %s75, %s91
    %p93 = scmp.eq.s32.totalorder %s18, 0
    %p94 = por %p92, %p93
    %s95 = ssub.s32 %s20, %s34
    %p96 = scmp.eq.s32.totalorder %s95, 0
    %s98 = sadd.s32 %s97, 1
    %s99 = scalar_select %p96, %s97, %s98
    %p102 = pneg %p96
    %p103 = scmp.eq.s32.totalorder %s12, 3
    %p104 = por %p102, %p103
    %p105 = scmp.ne.s32.totalorder %s97, %s100
    %p106 = scmp.eq.s32.totalorder %s12, 0
    %p107 = por %p105, %p106
    %p108 = scmp.ne.s32.totalorder %s97, %s100
    %p109 = scmp.eq.s32.totalorder %s17, 3
    %p110 = por %p108, %p109
    %p111 = scmp.ne.s32.totalorder %s100, %s101
    %p112 = scmp.eq.s32.totalorder %s17, 0
    %p113 = por %p111, %p112
    %p114 = scmp.ne.s32.totalorder %s100, %s101
    %p115 = scmp.eq.s32.totalorder %s18, 3
    %p116 = por %p114, %p115
    %p118 = scmp.ne.s32.totalorder %s101, %s117
    %p119 = scmp.eq.s32.totalorder %s18, 0
    %p120 = por %p118, %p119
    %s121 = ssub.s32 %s20, %s34
    %s122 = ssub.s32 %s19, %s38
    %s123 = sor.u32 %s121, %s122
    %p124 = scmp.eq.s32.totalorder %s123, 0
    %s126 = sadd.s32 %s125, 1
    %s127 = scalar_select %p124, %s125, %s126
    %p130 = pneg %p124
    %p131 = scmp.eq.s32.totalorder %s12, 3
    %p132 = por %p130, %p131
    %p133 = scmp.ne.s32.totalorder %s125, %s128
    %p134 = scmp.eq.s32.totalorder %s12, 0
    %p135 = por %p133, %p134
    %p136 = scmp.ne.s32.totalorder %s125, %s128
    %p137 = scmp.eq.s32.totalorder %s17, 3
    %p138 = por %p136, %p137
    %p139 = scmp.ne.s32.totalorder %s128, %s129
    %p140 = scmp.eq.s32.totalorder %s17, 0
    %p141 = por %p139, %p140
    %p142 = scmp.ne.s32.totalorder %s128, %s129
    %p143 = scmp.eq.s32.totalorder %s18, 3
    %p144 = por %p142, %p143
    %p146 = scmp.ne.s32.totalorder %s129, %s145
    %p147 = scmp.eq.s32.totalorder %s18, 0
    %p148 = por %p146, %p147
    %s149 = ssub.s32 %s20, %s34
    %s150 = ssub.s32 %s19, %s38
    %s151 = sor.u32 %s149, %s150
    %p152 = scmp.eq.s32.totalorder %s151, 0
    %s154 = sadd.s32 %s153, 1
    %s155 = scalar_select %p152, %s153, %s154
    %p158 = pneg %p152
    %p159 = scmp.eq.s32.totalorder %s12, 3
    %p160 = por %p158, %p159
    %p161 = scmp.ne.s32.totalorder %s153, %s156
    %p162 = scmp.eq.s32.totalorder %s12, 0
    %p163 = por %p161, %p162
    %p164 = scmp.ne.s32.totalorder %s153, %s156
    %p165 = scmp.eq.s32.totalorder %s17, 3
    %p166 = por %p164, %p165
    %p167 = scmp.ne.s32.totalorder %s156, %s157
    %p168 = scmp.eq.s32.totalorder %s17, 0
    %p169 = por %p167, %p168
    %p170 = scmp.ne.s32.totalorder %s156, %s157
    %p171 = scmp.eq.s32.totalorder %s18, 3
    %p172 = por %p170, %p171
    %p174 = scmp.ne.s32.totalorder %s157, %s173
    %p175 = scmp.eq.s32.totalorder %s18, 0
    %p176 = por %p174, %p175
    %s177 = ssub.s32 %s20, %s34
    %s178 = ssub.s32 %s19, %s38
    %s179 = sor.u32 %s177, %s178
    %p180 = scmp.eq.s32.totalorder %s179, 0
    %s182 = sadd.s32 %s181, 1
    %s183 = scalar_select %p180, %s181, %s182
    %p186 = pneg %p180
    %p187 = scmp.eq.s32.totalorder %s12, 3
    %p188 = por %p186, %p187
    %p189 = scmp.ne.s32.totalorder %s181, %s184
    %p190 = scmp.eq.s32.totalorder %s12, 0
    %p191 = por %p189, %p190
    %p192 = scmp.ne.s32.totalorder %s181, %s184
    %p193 = scmp.eq.s32.totalorder %s17, 3
    %p194 = por %p192, %p193
    %p195 = scmp.ne.s32.totalorder %s184, %s185
    %p196 = scmp.eq.s32.totalorder %s17, 0
    %p197 = por %p195, %p196
    %p198 = scmp.ne.s32.totalorder %s184, %s185
    %p199 = scmp.eq.s32.totalorder %s18, 3
    %p200 = por %p198, %p199
    %p202 = scmp.ne.s32.totalorder %s185, %s201
    %p203 = scmp.eq.s32.totalorder %s18, 0
    %p204 = por %p202, %p203
    %p205 = scmp.le.s32.totalorder 1, %s12
    %p206 = scmp.lt.s32.totalorder %s12, 5
    %p207 = pnand %p205, %p206
    %p208 = pneg %p207
    // Predicated region
    $region9: #{self_attention_forward.2} parent=5 // pred_check
      _
    $region10: #{self_attention_forward.2} parent=5 // pred_check_branch
      %210 = sbr.rel (%p207) target = $region12
    $region11: #{self_attention_forward.2} parent=5 // pred_region
      %s211 = ssub.s32 %s12, 1
      // Predicated region
      $region13: #{self_attention_forward.2} parent=11 // pred_check
        %p212 = pneg %p59
      $region14: #{self_attention_forward.2} parent=11 // pred_check_branch
        %214 = sbr.rel (%p212) target = $region16
      $region15: #{self_attention_forward.2} parent=11 // pred_region
        %s215 = smul.u32 2, %s22
        %p216 = scmp.lt.s32.totalorder %s215, 1
        %s217 = scalar_select %p216, %s215, 1
        %p218 = scmp.lt.s32.totalorder %s24, 0
        %s219 = scalar_select %p218, %s24, 0
        %s220 = sadd.s32 %s219, %s217
        %s221 = smul.addr %s220, 8
        %s222 = scalar_lea.vmem %s0, %s221
        %s223 = smul.u32 2, %s22
      $region16: #{self_attention_forward.2} parent=11 // pred_fallthru
        _
    $region12: #{self_attention_forward.2} parent=5 // pred_fallthru
      _
    %p224 = scmp.lt.s32.totalorder %s12, 4
    // Predicated region
    $region17: #{self_attention_forward.2} parent=5 // pred_check
      %p225 = pneg %p224
    $region18: #{self_attention_forward.2} parent=5 // pred_check_branch
      %227 = sbr.rel (%p225) target = $region20
    $region19: #{self_attention_forward.2} parent=5 // pred_region
      // Predicated region
      $region21: #{self_attention_forward.2} parent=19 // pred_check
        %p228 = pneg %p81
      $region22: #{self_attention_forward.2} parent=19 // pred_check_branch
        %230 = sbr.rel (%p228) target = $region24
      $region23: #{self_attention_forward.2} parent=19 // pred_region
        %s231 = smul.u32 4, %s21
        %p232 = scmp.lt.s32.totalorder %s20, 3
        %s233 = scalar_select %p232, %s20, 3
        %p234 = scmp.lt.s32.totalorder %s231, 3
        %s235 = scalar_select %p234, %s231, 3
        %s236 = smul.addr %s233, 4
        %s237 = sadd.s32 %s235, %s236
        %s238 = smul.addr %s237, 8
        %s239 = scalar_lea.vmem %s1, %s238
        %s240 = smul.u32 4, %s21
      $region24: #{self_attention_forward.2} parent=19 // pred_fallthru
        _
      // Predicated region
      $region25: #{self_attention_forward.2} parent=19 // pred_check
        %p241 = pneg %p107
      $region26: #{self_attention_forward.2} parent=19 // pred_check_branch
        %243 = sbr.rel (%p241) target = $region28
      $region27: #{self_attention_forward.2} parent=19 // pred_region
        %p244 = scmp.lt.s32.totalorder %s20, 3
        %s245 = scalar_select %p244, %s20, 3
        %s246 = scalar_lea.vmem %s2, %s245
      $region28: #{self_attention_forward.2} parent=19 // pred_fallthru
        _
    $region20: #{self_attention_forward.2} parent=5 // pred_fallthru
      _
    %p247 = scmp.le.s32.totalorder 1, %s12
    %p248 = scmp.lt.s32.totalorder %s12, 5
    %p249 = pnand %p247, %p248
    %p250 = pneg %p249
    // Predicated region
    $region29: #{self_attention_forward.2} parent=5 // pred_check
      _
    $region30: #{self_attention_forward.2} parent=5 // pred_check_branch
      %252 = sbr.rel (%p249) target = $region32
    $region31: #{self_attention_forward.2} parent=5 // pred_region
      %s253 = ssub.s32 %s12, 1
      %s254 = smul.u32 2, %s22
      %p255 = scmp.lt.s32.totalorder %s254, 1
      %s256 = scalar_select %p255, %s254, 1
      %p257 = scmp.lt.s32.totalorder %s24, 0
      %s258 = scalar_select %p257, %s24, 0
      %s259 = sadd.s32 %s258, %s256
      %s260 = smul.addr %s259, 8
      %s261 = scalar_lea.vmem %s0, %s260
      %p262 = pneg %p59
      %p263 = pneg %p56
      %s264 = smul.u32 4, %s24
      %p265 = scmp.lt.s32.totalorder %s23, 3
      %s266 = scalar_select %p265, %s23, 3
      %p267 = scmp.lt.s32.totalorder %s264, 3
      %s268 = scalar_select %p267, %s264, 3
      %s269 = smul.addr %s266, 4
      %s270 = sadd.s32 %s268, %s269
      %s271 = smul.addr %s270, 8
      %s272 = scalar_lea.vmem %s1, %s271
      %p273 = pneg %p87
      %p274 = pneg %p84
      %p275 = scmp.lt.s32.totalorder %s23, 3
      %s276 = scalar_select %p275, %s23, 3
      %s277 = scalar_lea.vmem %s2, %s276
      %p278 = pneg %p113
      %p279 = pneg %p110
      %p280 = pneg %p141
      %p281 = pneg %p138
      %s282 = smul.u32 2, %s22
      %p283 = scmp.lt.s32.totalorder %s23, 3
      %s284 = scalar_select %p283, %s23, 3
      %p285 = scmp.lt.s32.totalorder %s282, 1
      %s286 = scalar_select %p285, %s282, 1
      %s287 = smul.addr %s284, 2
      %s288 = sadd.s32 %s286, %s287
      %s289 = smul.addr %s288, 8
      %s290 = scalar_lea.vmem %s3, %s289
      %p291 = pneg %p169
      %p292 = pneg %p166
      %s293 = smul.u32 2, %s22
      %p294 = scmp.lt.s32.totalorder %s23, 3
      %s295 = scalar_select %p294, %s23, 3
      %p296 = scmp.lt.s32.totalorder %s293, 1
      %s297 = scalar_select %p296, %s293, 1
      %s298 = smul.addr %s295, 2
      %s299 = sadd.s32 %s297, %s298
      %s300 = smul.addr %s299, 8
      %s301 = scalar_lea.vmem %s4, %s300
      %p302 = pneg %p197
      %p303 = pneg %p194
      %s304 = smul.u32 2, %s22
      %p305 = scmp.lt.s32.totalorder %s23, 3
      %s306 = scalar_select %p305, %s23, 3
      %p307 = scmp.lt.s32.totalorder %s304, 1
      %s308 = scalar_select %p307, %s304, 1
      %s309 = smul.addr %s306, 2
      %s310 = sadd.s32 %s308, %s309
      %s311 = smul.addr %s310, 8
      %s312 = scalar_lea.vmem %s5, %s311
      %s313 = smul.u32 2, %s22
      %p314 = scmp.lt.s32.totalorder %s313, 1
      %s315 = scalar_select %p314, %s313, 1
      %p316 = scmp.lt.s32.totalorder %s24, 0
      %s317 = scalar_select %p316, %s24, 0
      %s318 = sadd.s32 %s317, %s315
      %s319 = smul.addr %s318, 8
      %s320 = scalar_lea.vmem %s0, %s319
      %s321 = smul.u32 2, %s22
      %s322 = smul.u32 4, %s24
      %p323 = scmp.lt.s32.totalorder %s23, 3
      %s324 = scalar_select %p323, %s23, 3
      %p325 = scmp.lt.s32.totalorder %s322, 3
      %s326 = scalar_select %p325, %s322, 3
      %s327 = smul.addr %s324, 4
      %s328 = sadd.s32 %s326, %s327
      %s329 = smul.addr %s328, 8
      %s330 = scalar_lea.vmem %s1, %s329
      %s331 = smul.u32 4, %s24
      %p332 = scmp.lt.s32.totalorder %s23, 3
      %s333 = scalar_select %p332, %s23, 3
      %s334 = scalar_lea.vmem %s2, %s333
      %s335 = smul.u32 2, %s22
      %p336 = scmp.lt.s32.totalorder %s23, 3
      %s337 = scalar_select %p336, %s23, 3
      %p338 = scmp.lt.s32.totalorder %s335, 1
      %s339 = scalar_select %p338, %s335, 1
      %s340 = smul.addr %s337, 2
      %s341 = sadd.s32 %s339, %s340
      %s342 = smul.addr %s341, 8
      %s343 = scalar_lea.vmem %s3, %s342
      %s344 = smul.u32 2, %s22
      %s345 = smul.u32 2, %s22
      %p346 = scmp.lt.s32.totalorder %s23, 3
      %s347 = scalar_select %p346, %s23, 3
      %p348 = scmp.lt.s32.totalorder %s345, 1
      %s349 = scalar_select %p348, %s345, 1
      %s350 = smul.addr %s347, 2
      %s351 = sadd.s32 %s349, %s350
      %s352 = smul.addr %s351, 8
      %s353 = scalar_lea.vmem %s4, %s352
      %s354 = smul.u32 2, %s22
      %s355 = smul.u32 2, %s22
      %p356 = scmp.lt.s32.totalorder %s23, 3
      %s357 = scalar_select %p356, %s23, 3
      %p358 = scmp.lt.s32.totalorder %s355, 1
      %s359 = scalar_select %p358, %s355, 1
      %s360 = smul.addr %s357, 2
      %s361 = sadd.s32 %s359, %s360
      %s362 = smul.addr %s361, 8
      %s363 = scalar_lea.vmem %s5, %s362
      %s364 = smul.u32 2, %s22
      %p365 = scmp.eq.s32.totalorder %s24, 0
      // Predicated region
      $region33: #{self_attention_forward.2} parent=31 // pred_check
        %p366 = pneg %p365
      $region34: #{self_attention_forward.2} parent=31 // pred_check_branch
        %368 = sbr.rel (%p366) target = $region36
      $region35: #{self_attention_forward.2} parent=31 // pred_region
        %vm369 = vcmask 392192
        %370 = vst.msk [vmem:[#allocation2] sm:$0xff] %vm369, 0.0
        %371 = vst.msk [vmem:[#allocation2 + $0x8] sm:$0xff] %vm369, 0.0
      $region36: #{self_attention_forward.2} parent=31 // pred_fallthru
        _
      %v372 = vld [vmem:[#allocation2] sm:$0xff]
      %v373 = vld [vmem:[#allocation2 + $0x8] sm:$0xff]
      %v374 = vld [vmem:[%s320] sm:$0xff]
      %v375 = vld [vmem:[%s320 + $0x8] sm:$0xff]
      %v376 = vld [vmem:[%s330] sm:$0xff]
      %v377 = vld [vmem:[%s330 + $0x8] sm:$0xff]
      %v378 = vld [vmem:[%s330 + $0x10] sm:$0xff]
      %v379 = vld [vmem:[%s330 + $0x18] sm:$0xff]
      %vm380 = vcmask 261120
      %v382 = vsel %vm380, %v374, 0
      %v385 = vsel %vm380, %v375, 0
      %387 = vmatpush.msra.mxu0 0.0
      %388 = vmatpush.msra.mxu0 0.0
      %389 = vmatpush.msra.mxu0 0.0
      %390 = vmatpush.msra.mxu0 0.0
      %391 = vmatpush.msra.mxu0 0.0
      %392 = vmatpush.msra.mxu0 0.0
      %393 = vmatpush.msra.mxu0 0.0
      %394 = vmatpush.msra.mxu0 0.0
      %395 = vmatpush.msra.mxu0 0.0
      %396 = vmatpush.msra.mxu0 0.0
      %397 = vmatpush.msra.mxu0 0.0
      %398 = vmatpush.msra.mxu0 0.0
      %399 = vmatpush.msra.mxu0 %v379
      %400 = vmatpush.msra.mxu0 %v378
      %401 = vmatpush.msra.mxu0 %v377
      %402 = vmatpush.msra.mxu0 %v376
      %403 = vmatmul.f32.gmra.mxu0 %v382
      %v404 = vpop.f32.mrf.mxu0
      %v405 = vadd.f32 0.0, %v404
      %406 = vmatmul.f32.gmra.mxu0 %v385
      %v407 = vpop.f32.mrf.mxu0
      %v408 = vadd.f32 0.0, %v407
      %409 = vdwg.mxu0
      %v410 = vadd.f32 %v372, %v405
      %v411 = vadd.f32 %v373, %v408
      %vm412 = vcmask 392192
      %413 = vst.msk [vmem:[#allocation2] sm:$0xff] %vm412, %v410
      %414 = vst.msk [vmem:[#allocation2 + $0x8] sm:$0xff] %vm412, %v411
      // Predicated region
      $region37: #{self_attention_forward.2} parent=31 // pred_check
        %p415 = pneg %p365
      $region38: #{self_attention_forward.2} parent=31 // pred_check_branch
        %417 = sbr.rel (%p415) target = $region40
      $region39: #{self_attention_forward.2} parent=31 // pred_region
        %v418 = vld [vmem:[#allocation2] sm:$0xff]
        %v419 = vld [vmem:[#allocation2 + $0x8] sm:$0xff]
        %v420 = vld [vmem:[%s334] sm:$0x1]
        %v422 = vperm.slane %v420, 0
        %v424 = vadd.f32 %v418, %v422
        %v425 = vadd.f32 %v419, %v422
        %vm426 = vcmask 130048
        %427 = vst.msk [vmem:[%s343] sm:$0xff] %vm426, %v424
        %428 = vst.msk [vmem:[%s343 + $0x8] sm:$0xff] %vm426, %v425
        %431 = vrot.lane.b32.xlu0 %v424, 112
        %v432 = vpop.permute.xlu0 %431
        %433 = vrot.lane.b32.xlu0 %v425, 112
        %v434 = vpop.permute.xlu0 %433
        %437 = vst.msk [vmem:[%s353] sm:$0xff] %vm426, %v432
        %438 = vst.msk [vmem:[%s353 + $0x8] sm:$0xff] %vm426, %v434
        %439 = vrot.lane.b32.xlu0 %v424, 96
        %v440 = vpop.permute.xlu0 %439
        %441 = vrot.lane.b32.xlu0 %v425, 96
        %v442 = vpop.permute.xlu0 %441
        %445 = vst.msk [vmem:[%s363] sm:$0xff] %vm426, %v440
        %446 = vst.msk [vmem:[%s363 + $0x8] sm:$0xff] %vm426, %v442
      $region40: #{self_attention_forward.2} parent=31 // pred_fallthru
        _
      %s447 = smul.u32 2, %s22
      %p448 = scmp.lt.s32.totalorder %s23, 3
      %s449 = scalar_select %p448, %s23, 3
      %p450 = scmp.lt.s32.totalorder %s447, 1
      %s451 = scalar_select %p450, %s447, 1
      %s452 = smul.addr %s449, 2
      %s453 = sadd.s32 %s451, %s452
      %s454 = smul.addr %s453, 8
      %s455 = scalar_lea.vmem %s3, %s454
      %s456 = smul.u32 2, %s22
      %p457 = scmp.lt.s32.totalorder %s23, 3
      %s458 = scalar_select %p457, %s23, 3
      %p459 = scmp.lt.s32.totalorder %s456, 1
      %s460 = scalar_select %p459, %s456, 1
      %s461 = smul.addr %s458, 2
      %s462 = sadd.s32 %s460, %s461
      %s463 = smul.addr %s462, 8
      %s464 = scalar_lea.vmem %s4, %s463
      %s465 = smul.u32 2, %s22
      %p466 = scmp.lt.s32.totalorder %s23, 3
      %s467 = scalar_select %p466, %s23, 3
      %p468 = scmp.lt.s32.totalorder %s465, 1
      %s469 = scalar_select %p468, %s465, 1
      %s470 = smul.addr %s467, 2
      %s471 = sadd.s32 %s469, %s470
      %s472 = smul.addr %s471, 8
      %s473 = scalar_lea.vmem %s5, %s472
      // Predicated region
      $region41: #{self_attention_forward.2} parent=31 // pred_check
        %p474 = pneg %p138
      $region42: #{self_attention_forward.2} parent=31 // pred_check_branch
        %476 = sbr.rel (%p474) target = $region44
      $region43: #{self_attention_forward.2} parent=31 // pred_region
        %s477 = smul.u32 2, %s22
      $region44: #{self_attention_forward.2} parent=31 // pred_fallthru
        _
      // Predicated region
      $region45: #{self_attention_forward.2} parent=31 // pred_check
        %p478 = pneg %p166
      $region46: #{self_attention_forward.2} parent=31 // pred_check_branch
        %480 = sbr.rel (%p478) target = $region48
      $region47: #{self_attention_forward.2} parent=31 // pred_region
        %s481 = smul.u32 2, %s22
      $region48: #{self_attention_forward.2} parent=31 // pred_fallthru
        _
      // Predicated region
      $region49: #{self_attention_forward.2} parent=31 // pred_check
        %p482 = pneg %p194
      $region50: #{self_attention_forward.2} parent=31 // pred_check_branch
        %484 = sbr.rel (%p482) target = $region52
      $region51: #{self_attention_forward.2} parent=31 // pred_region
        %s485 = smul.u32 2, %s22
      $region52: #{self_attention_forward.2} parent=31 // pred_fallthru
        _
    $region32: #{self_attention_forward.2} parent=5 // pred_fallthru
      _
    %p486 = scmp.le.s32.totalorder 2, %s12
    // Predicated region
    $region53: #{self_attention_forward.2} parent=5 // pred_check
      %p487 = pneg %p486
    $region54: #{self_attention_forward.2} parent=5 // pred_check_branch
      %489 = sbr.rel (%p487) target = $region56
    $region55: #{self_attention_forward.2} parent=5 // pred_region
      %s490 = ssub.s32 %s12, 2
      // Predicated region
      $region57: #{self_attention_forward.2} parent=55 // pred_check
        %p491 = pneg %p144
      $region58: #{self_attention_forward.2} parent=55 // pred_check_branch
        %493 = sbr.rel (%p491) target = $region60
      $region59: #{self_attention_forward.2} parent=55 // pred_region
        %s494 = smul.u32 2, %s25
        %p495 = scmp.lt.s32.totalorder %s26, 3
        %s496 = scalar_select %p495, %s26, 3
        %p497 = scmp.lt.s32.totalorder %s494, 1
        %s498 = scalar_select %p497, %s494, 1
        %s499 = smul.addr %s496, 2
        %s500 = sadd.s32 %s498, %s499
        %s501 = smul.addr %s500, 8
        %s502 = scalar_lea.vmem %s3, %s501
      $region60: #{self_attention_forward.2} parent=55 // pred_fallthru
        _
      // Predicated region
      $region61: #{self_attention_forward.2} parent=55 // pred_check
        %p503 = pneg %p172
      $region62: #{self_attention_forward.2} parent=55 // pred_check_branch
        %505 = sbr.rel (%p503) target = $region64
      $region63: #{self_attention_forward.2} parent=55 // pred_region
        %s506 = smul.u32 2, %s25
        %p507 = scmp.lt.s32.totalorder %s26, 3
        %s508 = scalar_select %p507, %s26, 3
        %p509 = scmp.lt.s32.totalorder %s506, 1
        %s510 = scalar_select %p509, %s506, 1
        %s511 = smul.addr %s508, 2
        %s512 = sadd.s32 %s510, %s511
        %s513 = smul.addr %s512, 8
        %s514 = scalar_lea.vmem %s4, %s513
      $region64: #{self_attention_forward.2} parent=55 // pred_fallthru
        _
      // Predicated region
      $region65: #{self_attention_forward.2} parent=55 // pred_check
        %p515 = pneg %p200
      $region66: #{self_attention_forward.2} parent=55 // pred_check_branch
        %517 = sbr.rel (%p515) target = $region68
      $region67: #{self_attention_forward.2} parent=55 // pred_region
        %s518 = smul.u32 2, %s25
        %p519 = scmp.lt.s32.totalorder %s26, 3
        %s520 = scalar_select %p519, %s26, 3
        %p521 = scmp.lt.s32.totalorder %s518, 1
        %s522 = scalar_select %p521, %s518, 1
        %s523 = smul.addr %s520, 2
        %s524 = sadd.s32 %s522, %s523
        %s525 = smul.addr %s524, 8
        %s526 = scalar_lea.vmem %s5, %s525
      $region68: #{self_attention_forward.2} parent=55 // pred_fallthru
        _
    $region56: #{self_attention_forward.2} parent=5 // pred_fallthru
      _
  $region6: #{self_attention_forward.2} parent=0 // loop_footer
    %s16 = sadd.s32 1, %s12
  $region7: #{self_attention_forward.2} parent=0 // loop_footer_branch
    %11 = sbr.rel target = $region3
  $region8: #{self_attention_forward.2} parent=0 // loop_exit
    _

// kernel: self_attention_forward.3
$region0: #{self_attention_forward.3}
  #allocation0 [shape = 'u32[]', space=smem, size = 0x4, offset = 0x4, fixed_abs, tag = 'smem constant byte address 0x4 - core index']
  #allocation1 [shape = 'u32[72,128]{1,0:T(1,128)}', space=vmem, size = 0x9000, scoped, tag = 'internal scratch']
  #allocation2 [shape = 'f32[8,32]{1,0:T(8,128)}', space=vmem, size = 0x1000, scoped, tag = 'scratch operand']
  %s0 = inlined_call_operand.vmem [shape: f32[4,2,8,16], index: 0, kind: input, shape index: {}]
  %s1 = inlined_call_operand.vmem [shape: f32[4,2,8,16], index: 1, kind: input, shape index: {}]
  %s2 = inlined_call_operand.vmem [shape: f32[4,2,8,16], index: 2, kind: input, shape index: {}]
  %s3 = inlined_call_operand.vmem [shape: f32[4,16,32], index: 3, kind: input, shape index: {}]
  %s4 = inlined_call_operand.vmem [shape: f32[1,32], index: 4, kind: input, shape index: {}]
  %s5 = inlined_call_operand.hbm [shape: f32[4,2,8,8], index: 5, kind: output, shape index: {0}]
  %s6 = inlined_call_operand.hbm [shape: f32[2,8,32], index: 6, kind: output, shape index: {1}]
  %7 = xla_tuple %s5, %s6
  %s8 = sld [smem:[#allocation0]]
  $region69: #{self_attention_forward.3} parent=0
    _
  %s10 = ssub.s32 1, %s8
  %s11 = scalar_select 0, %s10, %s8
  $region1: #{self_attention_forward.3} parent=0
    #allocation3 [shape = 'u8[8192]{0}', space=vmem, size = 0x2000, scoped, tag = 'output window, operand 0']
    #allocation4 [shape = 's32[2]{0}', space=sflag, size = 0x8, scoped, tag = 'scoped memory for self_attention_forward.3']
    #allocation5 [shape = 'u8[8192]{0}', space=vmem, size = 0x2000, scoped, tag = 'output window, operand 1']
    #allocation6 [shape = 's32[2]{0}', space=sflag, size = 0x8, scoped, tag = 'scoped memory for self_attention_forward.3']
    %12 = vsyncpa [#allocation4], 0
    %s13 = scalar_lea.sflag [#allocation4], 1
    %14 = vsyncpa %s13, 0
    %15 = vsyncpa [#allocation6], 0
    %s16 = scalar_lea.sflag [#allocation6], 1
    %17 = vsyncpa %s16, 0
    loop: start=0, step=1, limit=10
    $region2: #{self_attention_forward.3} parent=1 // loop_pre_header
      _
    $region3: #{self_attention_forward.3} parent=1 // loop_header
      %s19 = sphi 0, %s23
      %p20 = scmp.ge.s32.totalorder %s19, 10
      %s26 = sphi 0, %s45
      %s27 = sphi 0, %s41
      %s28 = sphi 0, %s37
      %s29 = sphi 0, %s26
      %s30 = sphi 0, %s27
      %s31 = sphi 0, %s28
      %s32 = sphi 0, %s29
      %s33 = sphi 0, %s30
      %s34 = sphi 0, %s31
      %s52 = sphi 0, %s54
      %s55 = sphi 0, %s52
      %s56 = sphi 0, %s55
      %s72 = sphi 0, %s56
      %s80 = sphi 0, %s82
      %s83 = sphi 0, %s80
      %s84 = sphi 0, %s83
      %s100 = sphi 0, %s84
      %s108 = sphi 0, %s110
      %s111 = sphi 0, %s108
      %s112 = sphi 0, %s111
      %s128 = sphi 0, %s112
      %s134 = sphi 0, %s136
      %s137 = sphi 0, %s134
      %s138 = sphi 0, %s137
      %s154 = sphi 0, %s138
      %s158 = sphi 0, %s158
      %s160 = sphi 0, %s158
      %s161 = sphi 0, %s160
      %s175 = sphi 0, %s161
      %s185 = sphi 0, %s187
      %s188 = sphi 0, %s185
      %s189 = sphi 0, %s188
      %s205 = sphi 0, %s189
      %s213 = sphi 0, %s215
      %s216 = sphi 0, %s213
      %s217 = sphi 0, %s216
      %s233 = sphi 0, %s217
    $region4: #{self_attention_forward.3} parent=1 // loop_header_branch
      %22 = sbr.rel (%p20) target = $region8
    $region5: #{self_attention_forward.3} parent=1 // loop_body
      %s24 = ssub.s32 %s19, 1
      %s25 = ssub.s32 %s19, 2
      %s35 = sadd.s32 1, %s28
      %p36 = scmp.ge.s32.totalorder %s35, 4
      %s37 = scalar_select %p36, 0, %s35
      %s38 = sadd.s32 1, %s27
      %s39 = scalar_select %p36, %s38, %s27
      %p40 = scmp.ge.s32.totalorder %s39, 1
      %s41 = scalar_select %p40, 0, %s39
      %s42 = sadd.s32 1, %s26
      %s43 = scalar_select %p40, %s42, %s26
      %p44 = scmp.ge.s32.totalorder %s43, 2
      %s45 = scalar_select %p44, 0, %s43
      %s46 = ssub.s32 %s28, %s37
      %s47 = ssub.s32 %s26, %s45
      %s48 = sor.u32 %s46, %s47
      %s49 = ssub.s32 %s27, %s41
      %s50 = sor.u32 %s48, %s49
      %p51 = scmp.eq.s32.totalorder %s50, 0
      %s53 = sadd.s32 %s52, 1
      %s54 = scalar_select %p51, %s52, %s53
      %p57 = pneg %p51
      %p58 = scmp.eq.s32.totalorder %s19, 7
      %p59 = por %p57, %p58
      %p60 = scmp.ne.s32.totalorder %s52, %s55
      %p61 = scmp.eq.s32.totalorder %s19, 0
      %p62 = por %p60, %p61
      %p63 = scmp.ne.s32.totalorder %s52, %s55
      %p64 = scmp.eq.s32.totalorder %s24, 7
      %p65 = por %p63, %p64
      %p66 = scmp.ne.s32.totalorder %s55, %s56
      %p67 = scmp.eq.s32.totalorder %s24, 0
      %p68 = por %p66, %p67
      %p69 = scmp.ne.s32.totalorder %s55, %s56
      %p70 = scmp.eq.s32.totalorder %s25, 7
      %p71 = por %p69, %p70
      %p73 = scmp.ne.s32.totalorder %s56, %s72
      %p74 = scmp.eq.s32.totalorder %s25, 0
      %p75 = por %p73, %p74
      %s76 = ssub.s32 %s28, %s37
      %s77 = ssub.s32 %s26, %s45
      %s78 = sor.u32 %s76, %s77
      %p79 = scmp.eq.s32.totalorder %s78, 0
      %s81 = sadd.s32 %s80, 1
      %s82 = scalar_select %p79, %s80, %s81
      %p85 = pneg %p79
      %p86 = scmp.eq.s32.totalorder %s19, 7
      %p87 = por %p85, %p86
      %p88 = scmp.ne.s32.totalorder %s80, %s83
      %p89 = scmp.eq.s32.totalorder %s19, 0
      %p90 = por %p88, %p89
      %p91 = scmp.ne.s32.totalorder %s80, %s83
      %p92 = scmp.eq.s32.totalorder %s24, 7
      %p93 = por %p91, %p92
      %p94 = scmp.ne.s32.totalorder %s83, %s84
      %p95 = scmp.eq.s32.totalorder %s24, 0
      %p96 = por %p94, %p95
      %p97 = scmp.ne.s32.totalorder %s83, %s84
      %p98 = scmp.eq.s32.totalorder %s25, 7
      %p99 = por %p97, %p98
      %p101 = scmp.ne.s32.totalorder %s84, %s100
      %p102 = scmp.eq.s32.totalorder %s25, 0
      %p103 = por %p101, %p102
      %s104 = ssub.s32 %s28, %s37
      %s105 = ssub.s32 %s26, %s45
      %s106 = sor.u32 %s104, %s105
      %p107 = scmp.eq.s32.totalorder %s106, 0
      %s109 = sadd.s32 %s108, 1
      %s110 = scalar_select %p107, %s108, %s109
      %p113 = pneg %p107
      %p114 = scmp.eq.s32.totalorder %s19, 7
      %p115 = por %p113, %p114
      %p116 = scmp.ne.s32.totalorder %s108, %s111
      %p117 = scmp.eq.s32.totalorder %s19, 0
      %p118 = por %p116, %p117
      %p119 = scmp.ne.s32.totalorder %s108, %s111
      %p120 = scmp.eq.s32.totalorder %s24, 7
      %p121 = por %p119, %p120
      %p122 = scmp.ne.s32.totalorder %s111, %s112
      %p123 = scmp.eq.s32.totalorder %s24, 0
      %p124 = por %p122, %p123
      %p125 = scmp.ne.s32.totalorder %s111, %s112
      %p126 = scmp.eq.s32.totalorder %s25, 7
      %p127 = por %p125, %p126
      %p129 = scmp.ne.s32.totalorder %s112, %s128
      %p130 = scmp.eq.s32.totalorder %s25, 0
      %p131 = por %p129, %p130
      %s132 = ssub.s32 %s28, %s37
      %p133 = scmp.eq.s32.totalorder %s132, 0
      %s135 = sadd.s32 %s134, 1
      %s136 = scalar_select %p133, %s134, %s135
      %p139 = pneg %p133
      %p140 = scmp.eq.s32.totalorder %s19, 7
      %p141 = por %p139, %p140
      %p142 = scmp.ne.s32.totalorder %s134, %s137
      %p143 = scmp.eq.s32.totalorder %s19, 0
      %p144 = por %p142, %p143
      %p145 = scmp.ne.s32.totalorder %s134, %s137
      %p146 = scmp.eq.s32.totalorder %s24, 7
      %p147 = por %p145, %p146
      %p148 = scmp.ne.s32.totalorder %s137, %s138
      %p149 = scmp.eq.s32.totalorder %s24, 0
      %p150 = por %p148, %p149
      %p151 = scmp.ne.s32.totalorder %s137, %s138
      %p152 = scmp.eq.s32.totalorder %s25, 7
      %p153 = por %p151, %p152
      %p155 = scmp.ne.s32.totalorder %s138, %s154
      %p156 = scmp.eq.s32.totalorder %s25, 0
      %p157 = por %p155, %p156
      %s159 = sadd.s32 %s158, 1
      %p162 = scmp.eq.s32.totalorder %s19, 7
      %p163 = scmp.ne.s32.totalorder %s158, %s160
      %p164 = scmp.eq.s32.totalorder %s19, 0
      %p165 = por %p163, %p164
      %p166 = scmp.ne.s32.totalorder %s158, %s160
      %p167 = scmp.eq.s32.totalorder %s24, 7
      %p168 = por %p166, %p167
      %p169 = scmp.ne.s32.totalorder %s160, %s161
      %p170 = scmp.eq.s32.totalorder %s24, 0
      %p171 = por %p169, %p170
      %p172 = scmp.ne.s32.totalorder %s160, %s161
      %p173 = scmp.eq.s32.totalorder %s25, 7
      %p174 = por %p172, %p173
      %p176 = scmp.ne.s32.totalorder %s161, %s175
      %p177 = scmp.eq.s32.totalorder %s25, 0
      %p178 = por %p176, %p177
      %s179 = ssub.s32 %s28, %s37
      %s180 = ssub.s32 %s26, %s45
      %s181 = sor.u32 %s179, %s180
      %s182 = ssub.s32 %s27, %s41
      %s183 = sor.u32 %s181, %s182
      %p184 = scmp.eq.s32.totalorder %s183, 0
      %s186 = sadd.s32 %s185, 1
      %s187 = scalar_select %p184, %s185, %s186
      %p190 = pneg %p184
      %p191 = scmp.eq.s32.totalorder %s19, 7
      %p192 = por %p190, %p191
      %p193 = scmp.ne.s32.totalorder %s185, %s188
      %p194 = scmp.eq.s32.totalorder %s19, 0
      %p195 = por %p193, %p194
      %p196 = scmp.ne.s32.totalorder %s185, %s188
      %p197 = scmp.eq.s32.totalorder %s24, 7
      %p198 = por %p196, %p197
      %p199 = scmp.ne.s32.totalorder %s188, %s189
      %p200 = scmp.eq.s32.totalorder %s24, 0
      %p201 = por %p199, %p200
      %p202 = scmp.ne.s32.totalorder %s188, %s189
      %p203 = scmp.eq.s32.totalorder %s25, 7
      %p204 = por %p202, %p203
      %p206 = scmp.ne.s32.totalorder %s189, %s205
      %p207 = scmp.eq.s32.totalorder %s25, 0
      %p208 = por %p206, %p207
      %s209 = ssub.s32 %s26, %s45
      %s210 = ssub.s32 %s27, %s41
      %s211 = sor.u32 %s209, %s210
      %p212 = scmp.eq.s32.totalorder %s211, 0
      %s214 = sadd.s32 %s213, 1
      %s215 = scalar_select %p212, %s213, %s214
      %p218 = pneg %p212
      %p219 = scmp.eq.s32.totalorder %s19, 7
      %p220 = por %p218, %p219
      %p221 = scmp.ne.s32.totalorder %s213, %s216
      %p222 = scmp.eq.s32.totalorder %s19, 0
      %p223 = por %p221, %p222
      %p224 = scmp.ne.s32.totalorder %s213, %s216
      %p225 = scmp.eq.s32.totalorder %s24, 7
      %p226 = por %p224, %p225
      %p227 = scmp.ne.s32.totalorder %s216, %s217
      %p228 = scmp.eq.s32.totalorder %s24, 0
      %p229 = por %p227, %p228
      %p230 = scmp.ne.s32.totalorder %s216, %s217
      %p231 = scmp.eq.s32.totalorder %s25, 7
      %p232 = por %p230, %p231
      %p234 = scmp.ne.s32.totalorder %s217, %s233
      %p235 = scmp.eq.s32.totalorder %s25, 0
      %p236 = por %p234, %p235
      %p237 = scmp.le.s32.totalorder 1, %s19
      %p238 = scmp.lt.s32.totalorder %s19, 9
      %p239 = pnand %p237, %p238
      %p240 = pneg %p239
      // Predicated region
      $region9: #{self_attention_forward.3} parent=5 // pred_check
        _
      $region10: #{self_attention_forward.3} parent=5 // pred_check_branch
        %242 = sbr.rel (%p239) target = $region12
      $region11: #{self_attention_forward.3} parent=5 // pred_region
        %s243 = ssub.s32 %s19, 1
        // Predicated region
        $region13: #{self_attention_forward.3} parent=11 // pred_check
          %p244 = pneg %p171
        $region14: #{self_attention_forward.3} parent=11 // pred_check_branch
          %246 = sbr.rel (%p244) target = $region16
        $region15: #{self_attention_forward.3} parent=11 // pred_region
          _
        $region16: #{self_attention_forward.3} parent=11 // pred_fallthru
          _
      $region12: #{self_attention_forward.3} parent=5 // pred_fallthru
        _
      %p247 = scmp.lt.s32.totalorder %s19, 8
      // Predicated region
      $region17: #{self_attention_forward.3} parent=5 // pred_check
        %p248 = pneg %p247
      $region18: #{self_attention_forward.3} parent=5 // pred_check_branch
        %250 = sbr.rel (%p248) target = $region20
      $region19: #{self_attention_forward.3} parent=5 // pred_region
        // Predicated region
        $region21: #{self_attention_forward.3} parent=19 // pred_check
          %p251 = pneg %p62
        $region22: #{self_attention_forward.3} parent=19 // pred_check_branch
          %253 = sbr.rel (%p251) target = $region24
        $region23: #{self_attention_forward.3} parent=19 // pred_region
          %p254 = scmp.lt.s32.totalorder %s28, 3
          %s255 = scalar_select %p254, %s28, 3
          %p256 = scmp.lt.s32.totalorder %s26, 1
          %s257 = scalar_select %p256, %s26, 1
          %p258 = scmp.lt.s32.totalorder %s27, 0
          %s259 = scalar_select %p258, %s27, 0
          %s260 = sadd.s32 %s259, %s257
          %s261 = smul.addr %s255, 2
          %s262 = sadd.s32 %s260, %s261
          %s263 = smul.addr %s262, 8
          %s264 = scalar_lea.vmem %s0, %s263
        $region24: #{self_attention_forward.3} parent=19 // pred_fallthru
          _
        // Predicated region
        $region25: #{self_attention_forward.3} parent=19 // pred_check
          %p265 = pneg %p90
        $region26: #{self_attention_forward.3} parent=19 // pred_check_branch
          %267 = sbr.rel (%p265) target = $region28
        $region27: #{self_attention_forward.3} parent=19 // pred_region
          %p268 = scmp.lt.s32.totalorder %s28, 3
          %s269 = scalar_select %p268, %s28, 3
          %p270 = scmp.lt.s32.totalorder %s26, 1
          %s271 = scalar_select %p270, %s26, 1
          %s272 = smul.addr %s269, 2
          %s273 = sadd.s32 %s271, %s272
          %s274 = smul.addr %s273, 8
          %s275 = scalar_lea.vmem %s1, %s274
        $region28: #{self_attention_forward.3} parent=19 // pred_fallthru
          _
        // Predicated region
        $region29: #{self_attention_forward.3} parent=19 // pred_check
          %p276 = pneg %p118
        $region30: #{self_attention_forward.3} parent=19 // pred_check_branch
          %278 = sbr.rel (%p276) target = $region32
        $region31: #{self_attention_forward.3} parent=19 // pred_region
          %p279 = scmp.lt.s32.totalorder %s28, 3
          %s280 = scalar_select %p279, %s28, 3
          %p281 = scmp.lt.s32.totalorder %s26, 1
          %s282 = scalar_select %p281, %s26, 1
          %s283 = smul.addr %s280, 2
          %s284 = sadd.s32 %s282, %s283
          %s285 = smul.addr %s284, 8
          %s286 = scalar_lea.vmem %s2, %s285
        $region32: #{self_attention_forward.3} parent=19 // pred_fallthru
          _
        // Predicated region
        $region33: #{self_attention_forward.3} parent=19 // pred_check
          %p287 = pneg %p144
        $region34: #{self_attention_forward.3} parent=19 // pred_check_branch
          %289 = sbr.rel (%p287) target = $region36
        $region35: #{self_attention_forward.3} parent=19 // pred_region
          %p290 = scmp.lt.s32.totalorder %s28, 3
          %s291 = scalar_select %p290, %s28, 3
          %s292 = smul.addr %s291, 2
          %s293 = smul.addr %s292, 8
          %s294 = scalar_lea.vmem %s3, %s293
        $region36: #{self_attention_forward.3} parent=19 // pred_fallthru
          _
      $region20: #{self_attention_forward.3} parent=5 // pred_fallthru
        _
      %p295 = scmp.le.s32.totalorder 1, %s19
      %p296 = scmp.lt.s32.totalorder %s19, 9
      %p297 = pnand %p295, %p296
      %p298 = pneg %p297
      // Predicated region
      $region37: #{self_attention_forward.3} parent=5 // pred_check
        _
      $region38: #{self_attention_forward.3} parent=5 // pred_check_branch
        %300 = sbr.rel (%p297) target = $region40
      $region39: #{self_attention_forward.3} parent=5 // pred_region
        %s301 = ssub.s32 %s19, 1
        %p302 = scmp.lt.s32.totalorder %s31, 3
        %s303 = scalar_select %p302, %s31, 3
        %p304 = scmp.lt.s32.totalorder %s29, 1
        %s305 = scalar_select %p304, %s29, 1
        %p306 = scmp.lt.s32.totalorder %s30, 0
        %s307 = scalar_select %p306, %s30, 0
        %s308 = sadd.s32 %s307, %s305
        %s309 = smul.addr %s303, 2
        %s310 = sadd.s32 %s308, %s309
        %s311 = smul.addr %s310, 8
        %s312 = scalar_lea.vmem %s0, %s311
        %p313 = pneg %p68
        %p314 = pneg %p65
        %p315 = scmp.lt.s32.totalorder %s31, 3
        %s316 = scalar_select %p315, %s31, 3
        %p317 = scmp.lt.s32.totalorder %s29, 1
        %s318 = scalar_select %p317, %s29, 1
        %s319 = smul.addr %s316, 2
        %s320 = sadd.s32 %s318, %s319
        %s321 = smul.addr %s320, 8
        %s322 = scalar_lea.vmem %s1, %s321
        %p323 = pneg %p96
        %p324 = pneg %p93
        %p325 = scmp.lt.s32.totalorder %s31, 3
        %s326 = scalar_select %p325, %s31, 3
        %p327 = scmp.lt.s32.totalorder %s29, 1
        %s328 = scalar_select %p327, %s29, 1
        %s329 = smul.addr %s326, 2
        %s330 = sadd.s32 %s328, %s329
        %s331 = smul.addr %s330, 8
        %s332 = scalar_lea.vmem %s2, %s331
        %p333 = pneg %p124
        %p334 = pneg %p121
        %p335 = scmp.lt.s32.totalorder %s31, 3
        %s336 = scalar_select %p335, %s31, 3
        %s337 = smul.addr %s336, 2
        %s338 = smul.addr %s337, 8
        %s339 = scalar_lea.vmem %s3, %s338
        %p340 = pneg %p150
        %p341 = pneg %p147
        %p342 = pneg %p171
        %p343 = pneg %p168
        %p344 = pneg %p201
        %p345 = pneg %p198
        %s346 = sand.u32 %s188, 1
        %s347 = scalar_lea.sflag [#allocation4], %s346
        %s348 = sand.u32 %s188, 1
        %s349 = smul.addr %s348, 8
        %s350 = scalar_lea.vmem [#allocation3], %s349
        %p351 = pneg %p229
        %p352 = pneg %p226
        %s353 = sand.u32 %s216, 1
        %s354 = scalar_lea.sflag [#allocation6], %s353
        %s355 = sand.u32 %s216, 1
        %s356 = smul.addr %s355, 8
        %s357 = scalar_lea.vmem [#allocation5], %s356
        %p358 = scmp.lt.s32.totalorder %s31, 3
        %s359 = scalar_select %p358, %s31, 3
        %p360 = scmp.lt.s32.totalorder %s29, 1
        %s361 = scalar_select %p360, %s29, 1
        %p362 = scmp.lt.s32.totalorder %s30, 0
        %s363 = scalar_select %p362, %s30, 0
        %s364 = sadd.s32 %s363, %s361
        %s365 = smul.addr %s359, 2
        %s366 = sadd.s32 %s364, %s365
        %s367 = smul.addr %s366, 8
        %s368 = scalar_lea.vmem %s0, %s367
        %p369 = scmp.lt.s32.totalorder %s31, 3
        %s370 = scalar_select %p369, %s31, 3
        %p371 = scmp.lt.s32.totalorder %s29, 1
        %s372 = scalar_select %p371, %s29, 1
        %s373 = smul.addr %s370, 2
        %s374 = sadd.s32 %s372, %s373
        %s375 = smul.addr %s374, 8
        %s376 = scalar_lea.vmem %s1, %s375
        %p377 = scmp.lt.s32.totalorder %s31, 3
        %s378 = scalar_select %p377, %s31, 3
        %p379 = scmp.lt.s32.totalorder %s29, 1
        %s380 = scalar_select %p379, %s29, 1
        %s381 = smul.addr %s378, 2
        %s382 = sadd.s32 %s380, %s381
        %s383 = smul.addr %s382, 8
        %s384 = scalar_lea.vmem %s2, %s383
        %p385 = scmp.lt.s32.totalorder %s31, 3
        %s386 = scalar_select %p385, %s31, 3
        %s387 = smul.addr %s386, 2
        %s388 = smul.addr %s387, 8
        %s389 = scalar_lea.vmem %s3, %s388
        %p390 = scmp.eq.s32.totalorder %s31, 0
        // Predicated region
        $region41: #{self_attention_forward.3} parent=39 // pred_check
          %p391 = pneg %p390
        $region42: #{self_attention_forward.3} parent=39 // pred_check_branch
          %393 = sbr.rel (%p391) target = $region44
        $region43: #{self_attention_forward.3} parent=39 // pred_region
          %vm394 = vcmask 261120
          %395 = vst.msk [vmem:[#allocation2] sm:$0xff] %vm394, 0.0
        $region44: #{self_attention_forward.3} parent=39 // pred_fallthru
          _
        %v396 = vld [vmem:[%s368] sm:$0xff]
        %v397 = vld [vmem:[%s376] sm:$0xff]
        %v398 = vld [vmem:[%s384] sm:$0xff]
        %vm399 = vcmask 130048
        %v401 = vsel %vm399, %v396, 0
        %v404 = vsel %vm399, %v397, 0
        %406 = vmatpush.xpose.msra.mxu0 0.0
        %407 = vmatpush.xpose.msra.mxu0 0.0
        %408 = vmatpush.xpose.msra.mxu0 0.0
        %409 = vmatpush.xpose.msra.mxu0 0.0
        %410 = vmatpush.xpose.msra.mxu0 0.0
        %411 = vmatpush.xpose.msra.mxu0 0.0
        %412 = vmatpush.xpose.msra.mxu0 0.0
        %413 = vmatpush.xpose.msra.mxu0 0.0
        %414 = vmatpush.xpose.msra.mxu0 0.0
        %415 = vmatpush.xpose.msra.mxu0 0.0
        %416 = vmatpush.xpose.msra.mxu0 0.0
        %417 = vmatpush.xpose.msra.mxu0 0.0
        %418 = vmatpush.xpose.msra.mxu0 0.0
        %419 = vmatpush.xpose.msra.mxu0 0.0
        %420 = vmatpush.xpose.msra.mxu0 0.0
        %421 = vmatpush.xpose.msra.mxu0 %v404
        %422 = vmatmul.f32.gmra.mxu0 %v401
        %v423 = vpop.f32.mrf.mxu0
        %v424 = vadd.f32 0.0, %v423
        %425 = vdwg.mxu0
        %v426 = vmul.f32 %v424, 0.25
        %vm427 = vcmask 64512
        %v428 = vsel %vm427, %v426, -inf
        %429 = vmax.xlane.f32.xlu0 %v428
        %v430 = vpop.xlane.xlu0 %429
        %v431 = vsub.f32 %v426, %v430
        %v432 = vmul.f32 %v431, 1.442695
        %v433 = vpow.pop %v432
        %v434 = vsel %vm427, %v433, 0.0
        %435 = vadd.xlane.f32.xlu0 %v434
        %v436 = vpop.xlane.xlu0 %435
        %v437 = vrcp.pop %v436
        %v438 = vmul.f32 %v436, %v437
        %v439 = vsub.f32 2.0, %v438
        %v440 = vmul.f32 %v437, %v439
        %v441 = vmul.f32 %v433, %v440
        %442 = vst.msk [vmem:[%s350] sm:$0xff] %vm427, %v441
        %v444 = vsel %vm427, %v441, 0
        %446 = vmatpush.msra.mxu0 0.0
        %447 = vmatpush.msra.mxu0 0.0
        %448 = vmatpush.msra.mxu0 0.0
        %449 = vmatpush.msra.mxu0 0.0
        %450 = vmatpush.msra.mxu0 0.0
        %451 = vmatpush.msra.mxu0 0.0
        %452 = vmatpush.msra.mxu0 0.0
        %453 = vmatpush.msra.mxu0 0.0
        %454 = vmatpush.msra.mxu0 0.0
        %455 = vmatpush.msra.mxu0 0.0
        %456 = vmatpush.msra.mxu0 0.0
        %457 = vmatpush.msra.mxu0 0.0
        %458 = vmatpush.msra.mxu0 0.0
        %459 = vmatpush.msra.mxu0 0.0
        %460 = vmatpush.msra.mxu0 0.0
        %461 = vmatpush.msra.mxu0 %v398
        %462 = vmatmul.f32.gmra.mxu0 %v444
        %v463 = vpop.f32.mrf.mxu0
        %v464 = vadd.f32 0.0, %v463
        %465 = vdwg.mxu0
        %v466 = vld [vmem:[#allocation2] sm:$0xff]
        %v467 = vld [vmem:[%s389] sm:$0xff]
        %v468 = vld [vmem:[%s389 + $0x8] sm:$0xff]
        %v470 = vsel %vm399, %v464, 0
        %472 = vmatpush.msra.mxu0 0.0
        %473 = vmatpush.msra.mxu0 0.0
        %474 = vmatpush.msra.mxu0 0.0
        %475 = vmatpush.msra.mxu0 0.0
        %476 = vmatpush.msra.mxu0 0.0
        %477 = vmatpush.msra.mxu0 0.0
        %478 = vmatpush.msra.mxu0 0.0
        %479 = vmatpush.msra.mxu0 0.0
        %480 = vmatpush.msra.mxu0 0.0
        %481 = vmatpush.msra.mxu0 0.0
        %482 = vmatpush.msra.mxu0 0.0
        %483 = vmatpush.msra.mxu0 0.0
        %484 = vmatpush.msra.mxu0 0.0
        %485 = vmatpush.msra.mxu0 0.0
        %486 = vmatpush.msra.mxu0 %v468
        %487 = vmatpush.msra.mxu0 %v467
        %488 = vmatmul.f32.gmra.mxu0 %v470
        %v489 = vpop.f32.mrf.mxu0
        %v490 = vadd.f32 0.0, %v489
        %491 = vdwg.mxu0
        %v492 = vadd.f32 %v466, %v490
        %vm493 = vcmask 261120
        %494 = vst.msk [vmem:[#allocation2] sm:$0xff] %vm493, %v492
        %p495 = scmp.eq.s32.totalorder %s31, 3
        // Predicated region
        $region45: #{self_attention_forward.3} parent=39 // pred_check
          %p496 = pneg %p495
        $region46: #{self_attention_forward.3} parent=39 // pred_check_branch
          %498 = sbr.rel (%p496) target = $region48
        $region47: #{self_attention_forward.3} parent=39 // pred_region
          %v499 = vld [vmem:[#allocation2] sm:$0xff]
          %v500 = vld [vmem:[%s4] sm:$0x1]
          %v502 = vperm.slane %v500, 0
          %v504 = vadd.f32 %v499, %v502
          %505 = vst.msk [vmem:[%s357] sm:$0xff] %vm493, %v504
        $region48: #{self_attention_forward.3} parent=39 // pred_fallthru
          _
        %s506 = sand.u32 %s188, 1
        %s507 = scalar_lea.sflag [#allocation4], %s506
        %s508 = sand.u32 %s188, 1
        %s509 = smul.addr %s508, 8
        %s510 = scalar_lea.vmem [#allocation3], %s509
        %s511 = sand.u32 %s216, 1
        %s512 = scalar_lea.sflag [#allocation6], %s511
        %s513 = sand.u32 %s216, 1
        %s514 = smul.addr %s513, 8
        %s515 = scalar_lea.vmem [#allocation5], %s514
        // Predicated region
        $region49: #{self_attention_forward.3} parent=39 // pred_check
          %p516 = pneg %p198
        $region50: #{self_attention_forward.3} parent=39 // pred_check_branch
          %518 = sbr.rel (%p516) target = $region52
        $region51: #{self_attention_forward.3} parent=39 // pred_region
          %520 = vsyncadd %s507, 0
          %s521 = sadd.s32 %s30, %s29
          %s522 = smul.addr %s31, 2
          %s523 = sadd.s32 %s521, %s522
          %s524 = smul.addr %s523, 8
          %s525 = scalar_lea.hbm %s5, %s524
          %s527 = sshll.u32 %s510, 4
          %s528 = int_to_ptr.vmem [resolvable:$true] %s527
          %s529 = sshll.u32 %s525, 4
          %s530 = int_to_ptr.hbm [resolvable:$true] %s529
          %532 = dma.vmem_to_hbm [thread:$0]  %s528, 128, %s530, %s507
        $region52: #{self_attention_forward.3} parent=39 // pred_fallthru
          _
        // Predicated region
        $region53: #{self_attention_forward.3} parent=39 // pred_check
          %p533 = pneg %p226
        $region54: #{self_attention_forward.3} parent=39 // pred_check_branch
          %535 = sbr.rel (%p533) target = $region56
        $region55: #{self_attention_forward.3} parent=39 // pred_region
          %537 = vsyncadd %s512, 0
          %s538 = sadd.s32 %s30, %s29
          %s539 = smul.addr %s538, 8
          %s540 = scalar_lea.hbm %s6, %s539
          %s542 = sshll.u32 %s515, 4
          %s543 = int_to_ptr.vmem [resolvable:$true] %s542
          %s544 = sshll.u32 %s540, 4
          %s545 = int_to_ptr.hbm [resolvable:$true] %s544
          %547 = dma.vmem_to_hbm [thread:$0]  %s543, 128, %s545, %s512
        $region56: #{self_attention_forward.3} parent=39 // pred_fallthru
          _
      $region40: #{self_attention_forward.3} parent=5 // pred_fallthru
        _
      %p548 = scmp.le.s32.totalorder 2, %s19
      // Predicated region
      $region57: #{self_attention_forward.3} parent=5 // pred_check
        %p549 = pneg %p548
      $region58: #{self_attention_forward.3} parent=5 // pred_check_branch
        %551 = sbr.rel (%p549) target = $region60
      $region59: #{self_attention_forward.3} parent=5 // pred_region
        %s552 = ssub.s32 %s19, 2
        // Predicated region
        $region61: #{self_attention_forward.3} parent=59 // pred_check
          %p553 = pneg %p204
        $region62: #{self_attention_forward.3} parent=59 // pred_check_branch
          %555 = sbr.rel (%p553) target = $region64
        $region63: #{self_attention_forward.3} parent=59 // pred_region
          %s556 = sand.u32 %s189, 1
          %s557 = scalar_lea.sflag [#allocation4], %s556
          %s558 = sand.u32 %s189, 1
          %s559 = smul.addr %s558, 8
          %s560 = scalar_lea.vmem [#allocation3], %s559
          %562 = dma.done %s557, 128
        $region64: #{self_attention_forward.3} parent=59 // pred_fallthru
          _
        // Predicated region
        $region65: #{self_attention_forward.3} parent=59 // pred_check
          %p563 = pneg %p232
        $region66: #{self_attention_forward.3} parent=59 // pred_check_branch
          %565 = sbr.rel (%p563) target = $region68
        $region67: #{self_attention_forward.3} parent=59 // pred_region
          %s566 = sand.u32 %s217, 1
          %s567 = scalar_lea.sflag [#allocation6], %s566
          %s568 = sand.u32 %s217, 1
          %s569 = smul.addr %s568, 8
          %s570 = scalar_lea.vmem [#allocation5], %s569
          %572 = dma.done %s567, 128
        $region68: #{self_attention_forward.3} parent=59 // pred_fallthru
          _
      $region60: #{self_attention_forward.3} parent=5 // pred_fallthru
        _
    $region6: #{self_attention_forward.3} parent=1 // loop_footer
      %s23 = sadd.s32 1, %s19
    $region7: #{self_attention_forward.3} parent=1 // loop_footer_branch
      %18 = sbr.rel target = $region3
    $region8: #{self_attention_forward.3} parent=1 // loop_exit
      _
    %573 = vsyncpa [#allocation4], 1
    %s574 = scalar_lea.sflag [#allocation4], 1
    %575 = vsyncpa %s574, 1
    %576 = vsyncpa [#allocation6], 1
    %s577 = scalar_lea.sflag [#allocation6], 1
    %578 = vsyncpa %s577, 1

</llo_original>
